<compile_context>
chip_gen: v7x
topology: tpu7x:2x2x1
jax: 0.10.0
libtpu: 0.0.40
codegen_flags: <defaults>
</compile_context>

<pallas_src>
import functools

import numpy as np
import jax
import jax.numpy as jnp
from jax import lax
from jax.experimental import pallas as pl
from jax.experimental.pallas import tpu as pltpu


# (dh, dw) offsets for the 3x3 conv taps, t = kh*3 + kw ordering (padding=1).
_TAPS = tuple((kh - 1, kw - 1) for kh in range(3) for kw in range(3))
_CENTER = 4   # t index of the (0, 0) tap -- needs no roll and no mask


# ---------------------------------------------------------------------------
# Fused Pallas kernel: B_blk images per grid step, per-image layout (C, H*W)
# ---------------------------------------------------------------------------
def _bottleneck_kernel(x_ref, mask_ref, w1_ref, b1_ref, w2_ref, b2_ref,
                       w3_ref, b3_ref, o_ref, *, width):
    """Fused ENet RegularBottleneck for a block of images laid out (B,C,HW)."""
    b_blk = x_ref.shape[0]
    hw = x_ref.shape[-1]
    cdt = w1_ref.dtype                       # MXU compute dtype (bf16 or f32)

    def per_image(b, carry):
        # --- ext_conv1: 1x1 projection + folded BN + ReLU -------------------
        y1 = jnp.dot(w1_ref[...], x_ref[b].astype(cdt),
                     preferred_element_type=jnp.float32)       # (Cmid, HW)
        y1 = jnp.maximum(y1 + b1_ref[...], 0.0).astype(cdt)    # cast ONCE

        # --- ext_conv2: 3x3 conv as 9 lane-rolled, border-masked taps -------
        # Center tap seeds the accumulator (no roll, its mask is all ones).
        acc = jnp.dot(w2_ref[_CENTER], y1, preferred_element_type=jnp.float32)
        for t, (dh, dw) in enumerate(_TAPS):
            if t == _CENTER:
                continue
            shift = (-(dh * width + dw)) % hw                  # static int
            tap = pltpu.roll(y1, shift, 1) * mask_ref[t:t + 1, :]
            acc = acc + jnp.dot(w2_ref[t], tap,
                                preferred_element_type=jnp.float32)
        y2 = jnp.maximum(acc + b2_ref[...], 0.0).astype(cdt)   # (Cmid, HW)

        # --- ext_conv3: 1x1 expansion + folded BN + ReLU ---------------------
        y3 = jnp.dot(w3_ref[...], y2, preferred_element_type=jnp.float32)
        y3 = jnp.maximum(y3 + b3_ref[...], 0.0)                # (C, HW) f32

        # TODO(synk): Dropout2d(p=0) / eval-mode dropout is an identity, omitted.
        # Residual add + final ReLU (re-read x here: keeps its live range short).
        o_ref[b] = jnp.maximum(x_ref[b] + y3, 0.0)
        return carry

    lax.fori_loop(0, b_blk, per_image, 0, unroll=b_blk <= 4)


# ---------------------------------------------------------------------------
# One-time parameter prep (BN folding, layout, dtype) and tap masks
# ---------------------------------------------------------------------------
def _tap_masks(h, w):
    """(9, H*W) 0/1 validity masks for the 3x3 taps (implements zero padding
    and prevents the flat lane-roll from wrapping across row boundaries)."""
    hh, ww = np.meshgrid(np.arange(h), np.arange(w), indexing="ij")
    rows = []
    for dh, dw in _TAPS:
        ok = (hh + dh >= 0) & (hh + dh < h) & (ww + dw >= 0) & (ww + dw < w)
        rows.append(ok.reshape(-1))
    return np.stack(rows).astype(np.float32)


def fold_params(p, compute_dtype=jnp.bfloat16, eps=1e-5):
    """Fold eval-mode BatchNorm into the conv weights ONCE (outside the
    per-call forward) and lay them out for the (C, H*W) kernel."""
    def scale(g, v):
        return g / jnp.sqrt(v + eps)

    s1 = scale(p["gamma1"], p["var1"])
    s2 = scale(p["gamma2"], p["var2"])
    s3 = scale(p["gamma3"], p["var3"])

    w1 = (p["w1_oihw"][:, :, 0, 0] * s1[:, None]).astype(compute_dtype)  # (Cmid,C)
    b1 = (p["beta1"] - p["mean1"] * s1)[:, None].astype(jnp.float32)

    w2 = p["w2_oihw"] * s2[:, None, None, None]                          # (Cmid,Cmid,3,3)
    cmid = w2.shape[0]
    w2 = jnp.transpose(w2, (2, 3, 0, 1)).reshape(9, cmid, cmid)          # t = kh*3+kw
    w2 = w2.astype(compute_dtype)
    b2 = (p["beta2"] - p["mean2"] * s2)[:, None].astype(jnp.float32)

    w3 = (p["w3_oihw"][:, :, 0, 0] * s3[:, None]).astype(compute_dtype)  # (C,Cmid)
    b3 = (p["beta3"] - p["mean3"] * s3)[:, None].astype(jnp.float32)
    return {"w1": w1, "b1": b1, "w2": w2, "b2": b2, "w3": w3, "b3": b3}


def make_params(key, channels, internal_ratio=4, ksize=3):
    """Deterministic raw module parameters (conv weights + eval-mode BN)."""
    cmid = channels // internal_ratio
    ks = jax.random.split(key, 15)
    p = {
        "w1_oihw": 0.2 * jax.random.normal(ks[0], (cmid, channels, 1, 1), jnp.float32),
        "w2_oihw": 0.2 * jax.random.normal(ks[1], (cmid, cmid, ksize, ksize), jnp.float32),
        "w3_oihw": 0.2 * jax.random.normal(ks[2], (channels, cmid, 1, 1), jnp.float32),
    }
    for i, c in zip((1, 2, 3), (cmid, cmid, channels)):
        base = 3 + 4 * (i - 1)
        p[f"gamma{i}"] = 1.0 + 0.1 * jax.random.normal(ks[base + 0], (c,), jnp.float32)
        p[f"beta{i}"]  = 0.1 * jax.random.normal(ks[base + 1], (c,), jnp.float32)
        p[f"mean{i}"]  = 0.1 * jax.random.normal(ks[base + 2], (c,), jnp.float32)
        p[f"var{i}"]   = 0.5 + jnp.abs(jax.random.normal(ks[base + 3], (c,), jnp.float32))
    return p


# ---------------------------------------------------------------------------
# Per-generation tiling / VMEM budgeting
# ---------------------------------------------------------------------------
def _vmem_capacity_bytes():
    try:
        return int(pltpu.get_tpu_info().vmem_capacity_bytes)
    except Exception:                              # pragma: no cover
        return 64 << 20                            # conservative (v7x per-TC)


def _vmem_bytes_needed(b_blk, c, cmid, hw, cdt_bytes):
    """Everything live per grid step: double-buffered x/out blocks, resident
    masks/weights, and in-kernel intermediates, plus Mosaic scratch headroom."""
    blk = b_blk * c * hw * 4
    io = 2 * blk + 2 * blk                         # x and out, double-buffered
    masks = 2 * 9 * hw * cdt_bytes
    weights = 2 * ((cmid * c + 9 * cmid * cmid + c * cmid) * cdt_bytes
                   + (2 * cmid + c) * 4)
    # Per-image live values inside the fori_loop body:
    #   x row + y3 (f32, C rows each) and ~8 Cmid-row f32 + 2 Cmid-row cdt slabs.
    interm = (2 * c + 8 * cmid) * hw * 4 + 2 * cmid * hw * cdt_bytes
    headroom = 4 << 20
    return io + masks + weights + interm + headroom


def _choose_batch_block(n, c, cmid, hw, cdt_bytes, vmem_cap):
    io_per_image = 2 * c * hw * 4                  # x in + out per image
    b = max(1, (2 << 20) // io_per_image)          # target ~2 MiB of I/O / step
    b = min(b, n)
    if n >= 2:                                     # keep >=2 grid steps (v7x: 2 TCs)
        b = min(b, max(1, n // 2))
    while b > 1 and _vmem_bytes_needed(b, c, cmid, hw, cdt_bytes) > int(0.8 * vmem_cap):
        b -= 1
    while n % b:                                   # full blocks only
        b -= 1
    return b


# ---------------------------------------------------------------------------
# Forward pass (Pallas) and pure-JAX reference
# ---------------------------------------------------------------------------
def regular_bottleneck_pallas(x_nchw, fp):
    n, c, h, w = x_nchw.shape
    hw = h * w
    cmid = fp["w1"].shape[0]
    cdt = fp["w1"].dtype
    cdt_bytes = jnp.dtype(cdt).itemsize

    vmem_cap = _vmem_capacity_bytes()
    b_blk = _choose_batch_block(n, c, cmid, hw, cdt_bytes, vmem_cap)
    vmem_limit = int(min(max(_vmem_bytes_needed(b_blk, c, cmid, hw, cdt_bytes),
                             32 << 20),
                         int(0.9 * vmem_cap)))
    # TODO(synk): very large H*W on v7x (64 MiB VMEM) additionally wants row-block
    # spatial tiling with a 1-row halo; not needed for these map sizes.

    # NCHW flatten is free for this layout: channels on sublanes, H*W on lanes.
    x2d = x_nchw.reshape(n, c, hw).astype(jnp.float32)
    masks = jnp.asarray(_tap_masks(h, w), dtype=cdt)        # (9, HW), 0/1 exact

    resident2 = lambda i: (0, 0)
    resident3 = lambda i: (0, 0, 0)

    flops_px = 2 * c * cmid + 2 * 9 * cmid * cmid + 2 * cmid * c
    cost = pl.CostEstimate(flops=int(flops_px) * n * hw,
                           transcendentals=0,
                           bytes_accessed=8 * c * n * hw)   # x read + out write

    kernel = functools.partial(_bottleneck_kernel, width=w)
    out2d = pl.pallas_call(
        kernel,
        out_shape=jax.ShapeDtypeStruct((n, c, hw), jnp.float32),
        grid=(n // b_blk,),
        in_specs=[
            pl.BlockSpec((b_blk, c, hw), lambda i: (i, 0, 0)),   # x (B_blk imgs)
            pl.BlockSpec((9, hw), resident2),                    # border masks
            pl.BlockSpec(fp["w1"].shape, resident2),             # folded weights
            pl.BlockSpec(fp["b1"].shape, resident2),
            pl.BlockSpec(fp["w2"].shape, resident3),
            pl.BlockSpec(fp["b2"].shape, resident2),
            pl.BlockSpec(fp["w3"].shape, resident2),
            pl.BlockSpec(fp["b3"].shape, resident2),
        ],
        out_specs=pl.BlockSpec((b_blk, c, hw), lambda i: (i, 0, 0)),
        compiler_params=pltpu.CompilerParams(
            dimension_semantics=("parallel",),
            vmem_limit_bytes=vmem_limit),
        cost_estimate=cost,
    )(x2d, masks, fp["w1"], fp["b1"], fp["w2"], fp["b2"], fp["w3"], fp["b3"])

    return out2d.reshape(n, c, h, w)


def regular_bottleneck_ref(x_nchw, p, padding=1, eps=1e-5):
    """Independent pure-JAX reference mirroring the PyTorch module (eval BN)."""
    def bn(x, g, b, m, v):
        s = g / jnp.sqrt(v + eps)
        return x * s[None, :, None, None] + (b - m * s)[None, :, None, None]

    def conv(x, wgt, pad):
        return lax.conv_general_dilated(
            x, wgt, window_strides=(1, 1), padding=[(pad, pad), (pad, pad)],
            dimension_numbers=("NCHW", "OIHW", "NCHW"))

    e = jax.nn.relu(bn(conv(x_nchw, p["w1_oihw"], 0),
                       p["gamma1"], p["beta1"], p["mean1"], p["var1"]))
    e = jax.nn.relu(bn(conv(e, p["w2_oihw"], padding),
                       p["gamma2"], p["beta2"], p["mean2"], p["var2"]))
    e = jax.nn.relu(bn(conv(e, p["w3_oihw"], 0),
                       p["gamma3"], p["beta3"], p["mean3"], p["var3"]))
    return jax.nn.relu(x_nchw + e)


# ---------------------------------------------------------------------------
if __name__ == "__main__":
    key = jax.random.PRNGKey(0)
    kx, kp = jax.random.split(key)

    N, C, H, W = 2, 16, 16, 16          # channels=16, internal_ratio=4 -> Cmid=4
    x = jax.random.normal(kx, (N, C, H, W), jnp.float32)
    raw = make_params(kp, channels=C, internal_ratio=4, ksize=3)

    ref = jax.block_until_ready(regular_bottleneck_ref(x, raw))

    # Strict correctness check with f32 MXU inputs (same fused kernel).
    fp32 = fold_params(raw, compute_dtype=jnp.float32)
    out32 = jax.block_until_ready(jax.jit(regular_bottleneck_pallas)(x, fp32))
    np.testing.assert_allclose(np.asarray(out32), np.asarray(ref),
                               rtol=1e-4, atol=1e-4)

    # Production path: bf16 MXU inputs, f32 accumulate / bias / residual.
    fbf16 = fold_params(raw, compute_dtype=jnp.bfloat16)
    outbf = jax.block_until_ready(jax.jit(regular_bottleneck_pallas)(x, fbf16))
    np.testing.assert_allclose(np.asarray(outbf), np.asarray(ref),
                               rtol=5e-2, atol=5e-2)

    print("KERNEL_OK")
</pallas_src>

<mosaic_0001>
module attributes {stable_mosaic.version = 11 : i64} {
  func.func @_bottleneck_kernel(%arg0: i32, %arg1: memref<1x16x256xf32, #tpu.memory_space<vmem>>, %arg2: memref<9x256xf32, #tpu.memory_space<vmem>>, %arg3: memref<4x16xf32, #tpu.memory_space<vmem>>, %arg4: memref<4x1xf32, #tpu.memory_space<vmem>>, %arg5: memref<9x4x4xf32, #tpu.memory_space<vmem>>, %arg6: memref<4x1xf32, #tpu.memory_space<vmem>>, %arg7: memref<16x4xf32, #tpu.memory_space<vmem>>, %arg8: memref<16x1xf32, #tpu.memory_space<vmem>>, %arg9: memref<1x16x256xf32, #tpu.memory_space<vmem>>) attributes {dimension_semantics = [#tpu.dimension_semantics<parallel>], iteration_bounds = array<i64: 2>, scalar_prefetch = 0 : i64, scratch_operands = 0 : i64, tpu.core_type = #tpu.core_type<tc>, window_params = [{transform_indices = @transform_0, window_bounds = array<i64: 1, 16, 256>}, {pipeline_mode = #tpu.pipeline_mode<synchronous>, transform_indices = @transform_1, window_bounds = array<i64: 9, 256>}, {pipeline_mode = #tpu.pipeline_mode<synchronous>, transform_indices = @transform_2, window_bounds = array<i64: 4, 16>}, {pipeline_mode = #tpu.pipeline_mode<synchronous>, transform_indices = @transform_3, window_bounds = array<i64: 4, 1>}, {pipeline_mode = #tpu.pipeline_mode<synchronous>, transform_indices = @transform_4, window_bounds = array<i64: 9, 4, 4>}, {pipeline_mode = #tpu.pipeline_mode<synchronous>, transform_indices = @transform_5, window_bounds = array<i64: 4, 1>}, {pipeline_mode = #tpu.pipeline_mode<synchronous>, transform_indices = @transform_6, window_bounds = array<i64: 16, 4>}, {pipeline_mode = #tpu.pipeline_mode<synchronous>, transform_indices = @transform_7, window_bounds = array<i64: 16, 1>}, {transform_indices = @transform_8, window_bounds = array<i64: 1, 16, 256>}]} {
    %c0_i32 = arith.constant 0 : i32
    %c0 = arith.constant 0 : index
    %c0_0 = arith.constant 0 : index
    %0 = vector.load %arg3[%c0, %c0_0] : memref<4x16xf32, #tpu.memory_space<vmem>>, vector<4x16xf32>
    %1 = arith.index_cast %c0_i32 : i32 to index
    %c0_1 = arith.constant 0 : index
    %c0_2 = arith.constant 0 : index
    %2 = vector.load %arg1[%1, %c0_1, %c0_2] : memref<1x16x256xf32, #tpu.memory_space<vmem>>, vector<1x16x256xf32>
    %3 = vector.shape_cast %2 : vector<1x16x256xf32> to vector<16x256xf32>
    %cst = arith.constant dense<0.000000e+00> : vector<4x256xf32>
    %4 = tpu.matmul %0, %3, %cst {dimension_numbers = #tpu.dot_dimension_numbers<[1], [0], [0], [1], [0, 0, 1, 1], [], []>} : vector<4x16xf32>, vector<16x256xf32>, vector<4x256xf32> -> vector<4x256xf32>
    %c0_3 = arith.constant 0 : index
    %c0_4 = arith.constant 0 : index
    %5 = vector.load %arg4[%c0_3, %c0_4] : memref<4x1xf32, #tpu.memory_space<vmem>>, vector<4x1xf32>
    %6 = vector.broadcast %5 : vector<4x1xf32> to vector<4x256xf32>
    %7 = arith.addf %4, %6 : vector<4x256xf32>
    %cst_5 = arith.constant 0.000000e+00 : f32
    %8 = vector.broadcast %cst_5 : f32 to vector<4x256xf32>
    %9 = arith.maximumf %7, %8 : vector<4x256xf32>
    %c4 = arith.constant 4 : index
    %c0_6 = arith.constant 0 : index
    %c0_7 = arith.constant 0 : index
    %10 = vector.load %arg5[%c4, %c0_6, %c0_7] : memref<9x4x4xf32, #tpu.memory_space<vmem>>, vector<1x4x4xf32>
    %11 = vector.shape_cast %10 : vector<1x4x4xf32> to vector<4x4xf32>
    %cst_8 = arith.constant dense<0.000000e+00> : vector<4x256xf32>
    %12 = tpu.matmul %11, %9, %cst_8 {dimension_numbers = #tpu.dot_dimension_numbers<[1], [0], [0], [1], [0, 0, 1, 1], [], []>} : vector<4x4xf32>, vector<4x256xf32>, vector<4x256xf32> -> vector<4x256xf32>
    %c17_i32 = arith.constant 17 : i32
    %13 = tpu.dynamic_rotate %9 by %c17_i32 dim 1 : vector<4x256xf32>, i32 -> vector<4x256xf32>
    %c0_9 = arith.constant 0 : index
    %c0_10 = arith.constant 0 : index
    %14 = vector.load %arg2[%c0_9, %c0_10] : memref<9x256xf32, #tpu.memory_space<vmem>>, vector<1x256xf32>
    %15 = vector.broadcast %14 : vector<1x256xf32> to vector<4x256xf32>
    %16 = arith.mulf %13, %15 : vector<4x256xf32>
    %c0_11 = arith.constant 0 : index
    %c0_12 = arith.constant 0 : index
    %c0_13 = arith.constant 0 : index
    %17 = vector.load %arg5[%c0_11, %c0_12, %c0_13] : memref<9x4x4xf32, #tpu.memory_space<vmem>>, vector<1x4x4xf32>
    %18 = vector.shape_cast %17 : vector<1x4x4xf32> to vector<4x4xf32>
    %cst_14 = arith.constant dense<0.000000e+00> : vector<4x256xf32>
    %19 = tpu.matmul %18, %16, %cst_14 {dimension_numbers = #tpu.dot_dimension_numbers<[1], [0], [0], [1], [0, 0, 1, 1], [], []>} : vector<4x4xf32>, vector<4x256xf32>, vector<4x256xf32> -> vector<4x256xf32>
    %20 = arith.addf %12, %19 : vector<4x256xf32>
    %c16_i32 = arith.constant 16 : i32
    %21 = tpu.dynamic_rotate %9 by %c16_i32 dim 1 : vector<4x256xf32>, i32 -> vector<4x256xf32>
    %c1 = arith.constant 1 : index
    %c0_15 = arith.constant 0 : index
    %22 = vector.load %arg2[%c1, %c0_15] : memref<9x256xf32, #tpu.memory_space<vmem>>, vector<1x256xf32>
    %23 = vector.broadcast %22 : vector<1x256xf32> to vector<4x256xf32>
    %24 = arith.mulf %21, %23 : vector<4x256xf32>
    %c1_16 = arith.constant 1 : index
    %c0_17 = arith.constant 0 : index
    %c0_18 = arith.constant 0 : index
    %25 = vector.load %arg5[%c1_16, %c0_17, %c0_18] : memref<9x4x4xf32, #tpu.memory_space<vmem>>, vector<1x4x4xf32>
    %26 = vector.shape_cast %25 : vector<1x4x4xf32> to vector<4x4xf32>
    %cst_19 = arith.constant dense<0.000000e+00> : vector<4x256xf32>
    %27 = tpu.matmul %26, %24, %cst_19 {dimension_numbers = #tpu.dot_dimension_numbers<[1], [0], [0], [1], [0, 0, 1, 1], [], []>} : vector<4x4xf32>, vector<4x256xf32>, vector<4x256xf32> -> vector<4x256xf32>
    %28 = arith.addf %20, %27 : vector<4x256xf32>
    %c15_i32 = arith.constant 15 : i32
    %29 = tpu.dynamic_rotate %9 by %c15_i32 dim 1 : vector<4x256xf32>, i32 -> vector<4x256xf32>
    %c2 = arith.constant 2 : index
    %c0_20 = arith.constant 0 : index
    %30 = vector.load %arg2[%c2, %c0_20] : memref<9x256xf32, #tpu.memory_space<vmem>>, vector<1x256xf32>
    %31 = vector.broadcast %30 : vector<1x256xf32> to vector<4x256xf32>
    %32 = arith.mulf %29, %31 : vector<4x256xf32>
    %c2_21 = arith.constant 2 : index
    %c0_22 = arith.constant 0 : index
    %c0_23 = arith.constant 0 : index
    %33 = vector.load %arg5[%c2_21, %c0_22, %c0_23] : memref<9x4x4xf32, #tpu.memory_space<vmem>>, vector<1x4x4xf32>
    %34 = vector.shape_cast %33 : vector<1x4x4xf32> to vector<4x4xf32>
    %cst_24 = arith.constant dense<0.000000e+00> : vector<4x256xf32>
    %35 = tpu.matmul %34, %32, %cst_24 {dimension_numbers = #tpu.dot_dimension_numbers<[1], [0], [0], [1], [0, 0, 1, 1], [], []>} : vector<4x4xf32>, vector<4x256xf32>, vector<4x256xf32> -> vector<4x256xf32>
    %36 = arith.addf %28, %35 : vector<4x256xf32>
    %c1_i32 = arith.constant 1 : i32
    %37 = tpu.dynamic_rotate %9 by %c1_i32 dim 1 : vector<4x256xf32>, i32 -> vector<4x256xf32>
    %c3 = arith.constant 3 : index
    %c0_25 = arith.constant 0 : index
    %38 = vector.load %arg2[%c3, %c0_25] : memref<9x256xf32, #tpu.memory_space<vmem>>, vector<1x256xf32>
    %39 = vector.broadcast %38 : vector<1x256xf32> to vector<4x256xf32>
    %40 = arith.mulf %37, %39 : vector<4x256xf32>
    %c3_26 = arith.constant 3 : index
    %c0_27 = arith.constant 0 : index
    %c0_28 = arith.constant 0 : index
    %41 = vector.load %arg5[%c3_26, %c0_27, %c0_28] : memref<9x4x4xf32, #tpu.memory_space<vmem>>, vector<1x4x4xf32>
    %42 = vector.shape_cast %41 : vector<1x4x4xf32> to vector<4x4xf32>
    %cst_29 = arith.constant dense<0.000000e+00> : vector<4x256xf32>
    %43 = tpu.matmul %42, %40, %cst_29 {dimension_numbers = #tpu.dot_dimension_numbers<[1], [0], [0], [1], [0, 0, 1, 1], [], []>} : vector<4x4xf32>, vector<4x256xf32>, vector<4x256xf32> -> vector<4x256xf32>
    %44 = arith.addf %36, %43 : vector<4x256xf32>
    %c255_i32 = arith.constant 255 : i32
    %45 = tpu.dynamic_rotate %9 by %c255_i32 dim 1 : vector<4x256xf32>, i32 -> vector<4x256xf32>
    %c5 = arith.constant 5 : index
    %c0_30 = arith.constant 0 : index
    %46 = vector.load %arg2[%c5, %c0_30] : memref<9x256xf32, #tpu.memory_space<vmem>>, vector<1x256xf32>
    %47 = vector.broadcast %46 : vector<1x256xf32> to vector<4x256xf32>
    %48 = arith.mulf %45, %47 : vector<4x256xf32>
    %c5_31 = arith.constant 5 : index
    %c0_32 = arith.constant 0 : index
    %c0_33 = arith.constant 0 : index
    %49 = vector.load %arg5[%c5_31, %c0_32, %c0_33] : memref<9x4x4xf32, #tpu.memory_space<vmem>>, vector<1x4x4xf32>
    %50 = vector.shape_cast %49 : vector<1x4x4xf32> to vector<4x4xf32>
    %cst_34 = arith.constant dense<0.000000e+00> : vector<4x256xf32>
    %51 = tpu.matmul %50, %48, %cst_34 {dimension_numbers = #tpu.dot_dimension_numbers<[1], [0], [0], [1], [0, 0, 1, 1], [], []>} : vector<4x4xf32>, vector<4x256xf32>, vector<4x256xf32> -> vector<4x256xf32>
    %52 = arith.addf %44, %51 : vector<4x256xf32>
    %c241_i32 = arith.constant 241 : i32
    %53 = tpu.dynamic_rotate %9 by %c241_i32 dim 1 : vector<4x256xf32>, i32 -> vector<4x256xf32>
    %c6 = arith.constant 6 : index
    %c0_35 = arith.constant 0 : index
    %54 = vector.load %arg2[%c6, %c0_35] : memref<9x256xf32, #tpu.memory_space<vmem>>, vector<1x256xf32>
    %55 = vector.broadcast %54 : vector<1x256xf32> to vector<4x256xf32>
    %56 = arith.mulf %53, %55 : vector<4x256xf32>
    %c6_36 = arith.constant 6 : index
    %c0_37 = arith.constant 0 : index
    %c0_38 = arith.constant 0 : index
    %57 = vector.load %arg5[%c6_36, %c0_37, %c0_38] : memref<9x4x4xf32, #tpu.memory_space<vmem>>, vector<1x4x4xf32>
    %58 = vector.shape_cast %57 : vector<1x4x4xf32> to vector<4x4xf32>
    %cst_39 = arith.constant dense<0.000000e+00> : vector<4x256xf32>
    %59 = tpu.matmul %58, %56, %cst_39 {dimension_numbers = #tpu.dot_dimension_numbers<[1], [0], [0], [1], [0, 0, 1, 1], [], []>} : vector<4x4xf32>, vector<4x256xf32>, vector<4x256xf32> -> vector<4x256xf32>
    %60 = arith.addf %52, %59 : vector<4x256xf32>
    %c240_i32 = arith.constant 240 : i32
    %61 = tpu.dynamic_rotate %9 by %c240_i32 dim 1 : vector<4x256xf32>, i32 -> vector<4x256xf32>
    %c7 = arith.constant 7 : index
    %c0_40 = arith.constant 0 : index
    %62 = vector.load %arg2[%c7, %c0_40] : memref<9x256xf32, #tpu.memory_space<vmem>>, vector<1x256xf32>
    %63 = vector.broadcast %62 : vector<1x256xf32> to vector<4x256xf32>
    %64 = arith.mulf %61, %63 : vector<4x256xf32>
    %c7_41 = arith.constant 7 : index
    %c0_42 = arith.constant 0 : index
    %c0_43 = arith.constant 0 : index
    %65 = vector.load %arg5[%c7_41, %c0_42, %c0_43] : memref<9x4x4xf32, #tpu.memory_space<vmem>>, vector<1x4x4xf32>
    %66 = vector.shape_cast %65 : vector<1x4x4xf32> to vector<4x4xf32>
    %cst_44 = arith.constant dense<0.000000e+00> : vector<4x256xf32>
    %67 = tpu.matmul %66, %64, %cst_44 {dimension_numbers = #tpu.dot_dimension_numbers<[1], [0], [0], [1], [0, 0, 1, 1], [], []>} : vector<4x4xf32>, vector<4x256xf32>, vector<4x256xf32> -> vector<4x256xf32>
    %68 = arith.addf %60, %67 : vector<4x256xf32>
    %c239_i32 = arith.constant 239 : i32
    %69 = tpu.dynamic_rotate %9 by %c239_i32 dim 1 : vector<4x256xf32>, i32 -> vector<4x256xf32>
    %c8 = arith.constant 8 : index
    %c0_45 = arith.constant 0 : index
    %70 = vector.load %arg2[%c8, %c0_45] : memref<9x256xf32, #tpu.memory_space<vmem>>, vector<1x256xf32>
    %71 = vector.broadcast %70 : vector<1x256xf32> to vector<4x256xf32>
    %72 = arith.mulf %69, %71 : vector<4x256xf32>
    %c8_46 = arith.constant 8 : index
    %c0_47 = arith.constant 0 : index
    %c0_48 = arith.constant 0 : index
    %73 = vector.load %arg5[%c8_46, %c0_47, %c0_48] : memref<9x4x4xf32, #tpu.memory_space<vmem>>, vector<1x4x4xf32>
    %74 = vector.shape_cast %73 : vector<1x4x4xf32> to vector<4x4xf32>
    %cst_49 = arith.constant dense<0.000000e+00> : vector<4x256xf32>
    %75 = tpu.matmul %74, %72, %cst_49 {dimension_numbers = #tpu.dot_dimension_numbers<[1], [0], [0], [1], [0, 0, 1, 1], [], []>} : vector<4x4xf32>, vector<4x256xf32>, vector<4x256xf32> -> vector<4x256xf32>
    %76 = arith.addf %68, %75 : vector<4x256xf32>
    %c0_50 = arith.constant 0 : index
    %c0_51 = arith.constant 0 : index
    %77 = vector.load %arg6[%c0_50, %c0_51] : memref<4x1xf32, #tpu.memory_space<vmem>>, vector<4x1xf32>
    %78 = vector.broadcast %77 : vector<4x1xf32> to vector<4x256xf32>
    %79 = arith.addf %76, %78 : vector<4x256xf32>
    %cst_52 = arith.constant 0.000000e+00 : f32
    %80 = vector.broadcast %cst_52 : f32 to vector<4x256xf32>
    %81 = arith.maximumf %79, %80 : vector<4x256xf32>
    %c0_53 = arith.constant 0 : index
    %c0_54 = arith.constant 0 : index
    %82 = vector.load %arg7[%c0_53, %c0_54] : memref<16x4xf32, #tpu.memory_space<vmem>>, vector<16x4xf32>
    %cst_55 = arith.constant dense<0.000000e+00> : vector<16x256xf32>
    %83 = tpu.matmul %82, %81, %cst_55 {dimension_numbers = #tpu.dot_dimension_numbers<[1], [0], [0], [1], [0, 0, 1, 1], [], []>} : vector<16x4xf32>, vector<4x256xf32>, vector<16x256xf32> -> vector<16x256xf32>
    %c0_56 = arith.constant 0 : index
    %c0_57 = arith.constant 0 : index
    %84 = vector.load %arg8[%c0_56, %c0_57] : memref<16x1xf32, #tpu.memory_space<vmem>>, vector<16x1xf32>
    %85 = vector.broadcast %84 : vector<16x1xf32> to vector<16x256xf32>
    %86 = arith.addf %83, %85 : vector<16x256xf32>
    %cst_58 = arith.constant 0.000000e+00 : f32
    %87 = vector.broadcast %cst_58 : f32 to vector<16x256xf32>
    %88 = arith.maximumf %86, %87 : vector<16x256xf32>
    %89 = arith.index_cast %c0_i32 : i32 to index
    %c0_59 = arith.constant 0 : index
    %c0_60 = arith.constant 0 : index
    %90 = vector.load %arg1[%89, %c0_59, %c0_60] : memref<1x16x256xf32, #tpu.memory_space<vmem>>, vector<1x16x256xf32>
    %91 = vector.shape_cast %90 : vector<1x16x256xf32> to vector<16x256xf32>
    %92 = arith.addf %91, %88 : vector<16x256xf32>
    %cst_61 = arith.constant 0.000000e+00 : f32
    %93 = vector.broadcast %cst_61 : f32 to vector<16x256xf32>
    %94 = arith.maximumf %92, %93 : vector<16x256xf32>
    %95 = arith.index_cast %c0_i32 : i32 to index
    %c0_62 = arith.constant 0 : index
    %c0_63 = arith.constant 0 : index
    %96 = vector.load %arg9[%95, %c0_62, %c0_63] : memref<1x16x256xf32, #tpu.memory_space<vmem>>, vector<1x16x256xf32>
    %97 = vector.shape_cast %96 : vector<1x16x256xf32> to vector<16x256xf32>
    %98 = vector.shape_cast %94 : vector<16x256xf32> to vector<1x16x256xf32>
    tpu.vector_store %arg9[%95, %c0_62, %c0_63], %98 {strides = array<i32>} : memref<1x16x256xf32, #tpu.memory_space<vmem>>, vector<1x16x256xf32>,
    %c1_i32_64 = arith.constant 1 : i32
    return
  }
  func.func @transform_0(%arg0: i32) -> (i32, i32, i32) {
    %c0_i32 = arith.constant 0 : i32
    %c0_i32_0 = arith.constant 0 : i32
    %c0_i32_1 = arith.constant 0 : i32
    return %arg0, %c0_i32, %c0_i32_0 : i32, i32, i32
  }
  func.func @transform_1(%arg0: i32) -> (i32, i32) {
    %c0_i32 = arith.constant 0 : i32
    %c0_i32_0 = arith.constant 0 : i32
    %c0_i32_1 = arith.constant 0 : i32
    return %c0_i32, %c0_i32_0 : i32, i32
  }
  func.func @transform_2(%arg0: i32) -> (i32, i32) {
    %c0_i32 = arith.constant 0 : i32
    %c0_i32_0 = arith.constant 0 : i32
    %c0_i32_1 = arith.constant 0 : i32
    return %c0_i32, %c0_i32_0 : i32, i32
  }
  func.func @transform_3(%arg0: i32) -> (i32, i32) {
    %c0_i32 = arith.constant 0 : i32
    %c0_i32_0 = arith.constant 0 : i32
    %c0_i32_1 = arith.constant 0 : i32
    return %c0_i32, %c0_i32_0 : i32, i32
  }
  func.func @transform_4(%arg0: i32) -> (i32, i32, i32) {
    %c0_i32 = arith.constant 0 : i32
    %c0_i32_0 = arith.constant 0 : i32
    %c0_i32_1 = arith.constant 0 : i32
    %c0_i32_2 = arith.constant 0 : i32
    return %c0_i32, %c0_i32_0, %c0_i32_1 : i32, i32, i32
  }
  func.func @transform_5(%arg0: i32) -> (i32, i32) {
    %c0_i32 = arith.constant 0 : i32
    %c0_i32_0 = arith.constant 0 : i32
    %c0_i32_1 = arith.constant 0 : i32
    return %c0_i32, %c0_i32_0 : i32, i32
  }
  func.func @transform_6(%arg0: i32) -> (i32, i32) {
    %c0_i32 = arith.constant 0 : i32
    %c0_i32_0 = arith.constant 0 : i32
    %c0_i32_1 = arith.constant 0 : i32
    return %c0_i32, %c0_i32_0 : i32, i32
  }
  func.func @transform_7(%arg0: i32) -> (i32, i32) {
    %c0_i32 = arith.constant 0 : i32
    %c0_i32_0 = arith.constant 0 : i32
    %c0_i32_1 = arith.constant 0 : i32
    return %c0_i32, %c0_i32_0 : i32, i32
  }
  func.func @transform_8(%arg0: i32) -> (i32, i32, i32) {
    %c0_i32 = arith.constant 0 : i32
    %c0_i32_0 = arith.constant 0 : i32
    %c0_i32_1 = arith.constant 0 : i32
    return %arg0, %c0_i32, %c0_i32_0 : i32, i32, i32
  }
}

</mosaic_0001>

<llo_original>
// kernel: regular_bottleneck_pallas.1
$region0: #{regular_bottleneck_pallas.1}
  #allocation0 [shape = 'u32[]', space=smem, size = 0x4, offset = 0x4, fixed_abs, tag = 'smem constant byte address 0x4 - core index']
  #allocation1 [shape = 'u32[144,128]{1,0:T(1,128)}', space=vmem, size = 0x12000, scoped, tag = 'internal scratch']
  %s0 = inlined_call_operand.vmem [shape: f32[2,16,256], index: 0, kind: input, shape index: {}]
  %s1 = inlined_call_operand.vmem [shape: f32[9,256], index: 1, kind: input, shape index: {}]
  %s2 = inlined_call_operand.vmem [shape: f32[4,16], index: 2, kind: input, shape index: {}]
  %s3 = inlined_call_operand.vmem [shape: f32[4,1], index: 3, kind: input, shape index: {}]
  %s4 = inlined_call_operand.vmem [shape: f32[9,4,4], index: 4, kind: input, shape index: {}]
  %s5 = inlined_call_operand.vmem [shape: f32[4,1], index: 5, kind: input, shape index: {}]
  %s6 = inlined_call_operand.vmem [shape: f32[16,4], index: 6, kind: input, shape index: {}]
  %s7 = inlined_call_operand.vmem [shape: f32[16,1], index: 7, kind: input, shape index: {}]
  %s8 = inlined_call_operand.vmem [shape: f32[2,16,256], index: 8, kind: output, shape index: {}]
  %s9 = sld [smem:[#allocation0]]
  $region65: #{regular_bottleneck_pallas.1} parent=0
    _
  %s11 = ssub.s32 1, %s9
  %s12 = scalar_select 0, %s11, %s9
  loop: start=0, step=1, limit=4
  $region2: #{regular_bottleneck_pallas.1} parent=0 // loop_pre_header
    _
  $region3: #{regular_bottleneck_pallas.1} parent=0 // loop_header
    %s14 = sphi 0, %s18
    %p15 = scmp.ge.s32.totalorder %s14, 4
    %s24 = sphi 0, %s26
    %s27 = sphi 0, %s24
    %s28 = sphi 0, %s27
    %s44 = sphi 0, %s28
    %s48 = sphi 0, %s48
    %s50 = sphi 0, %s48
    %s51 = sphi 0, %s50
    %s65 = sphi 0, %s51
    %s69 = sphi 0, %s69
    %s71 = sphi 0, %s69
    %s72 = sphi 0, %s71
    %s86 = sphi 0, %s72
    %s90 = sphi 0, %s90
    %s92 = sphi 0, %s90
    %s93 = sphi 0, %s92
    %s107 = sphi 0, %s93
    %s111 = sphi 0, %s111
    %s113 = sphi 0, %s111
    %s114 = sphi 0, %s113
    %s128 = sphi 0, %s114
    %s132 = sphi 0, %s132
    %s134 = sphi 0, %s132
    %s135 = sphi 0, %s134
    %s149 = sphi 0, %s135
    %s153 = sphi 0, %s153
    %s155 = sphi 0, %s153
    %s156 = sphi 0, %s155
    %s170 = sphi 0, %s156
    %s174 = sphi 0, %s174
    %s176 = sphi 0, %s174
    %s177 = sphi 0, %s176
    %s191 = sphi 0, %s177
    %s197 = sphi 0, %s199
    %s200 = sphi 0, %s197
    %s201 = sphi 0, %s200
    %s217 = sphi 0, %s201
  $region4: #{regular_bottleneck_pallas.1} parent=0 // loop_header_branch
    %17 = sbr.rel (%p15) target = $region8
  $region5: #{regular_bottleneck_pallas.1} parent=0 // loop_body
    %s19 = ssub.s32 %s14, 1
    %s20 = ssub.s32 %s14, 2
    %s21 = sadd.s32 %s14, 1
    %s22 = ssub.s32 %s14, %s21
    %p23 = scmp.eq.s32.totalorder %s22, 0
    %s25 = sadd.s32 %s24, 1
    %s26 = scalar_select %p23, %s24, %s25
    %p29 = pneg %p23
    %p30 = scmp.eq.s32.totalorder %s14, 1
    %p31 = por %p29, %p30
    %p32 = scmp.ne.s32.totalorder %s24, %s27
    %p33 = scmp.eq.s32.totalorder %s14, 0
    %p34 = por %p32, %p33
    %p35 = scmp.ne.s32.totalorder %s24, %s27
    %p36 = scmp.eq.s32.totalorder %s19, 1
    %p37 = por %p35, %p36
    %p38 = scmp.ne.s32.totalorder %s27, %s28
    %p39 = scmp.eq.s32.totalorder %s19, 0
    %p40 = por %p38, %p39
    %p41 = scmp.ne.s32.totalorder %s27, %s28
    %p42 = scmp.eq.s32.totalorder %s20, 1
    %p43 = por %p41, %p42
    %p45 = scmp.ne.s32.totalorder %s28, %s44
    %p46 = scmp.eq.s32.totalorder %s20, 0
    %p47 = por %p45, %p46
    %s49 = sadd.s32 %s48, 1
    %p52 = scmp.eq.s32.totalorder %s14, 1
    %p53 = scmp.ne.s32.totalorder %s48, %s50
    %p54 = scmp.eq.s32.totalorder %s14, 0
    %p55 = por %p53, %p54
    %p56 = scmp.ne.s32.totalorder %s48, %s50
    %p57 = scmp.eq.s32.totalorder %s19, 1
    %p58 = por %p56, %p57
    %p59 = scmp.ne.s32.totalorder %s50, %s51
    %p60 = scmp.eq.s32.totalorder %s19, 0
    %p61 = por %p59, %p60
    %p62 = scmp.ne.s32.totalorder %s50, %s51
    %p63 = scmp.eq.s32.totalorder %s20, 1
    %p64 = por %p62, %p63
    %p66 = scmp.ne.s32.totalorder %s51, %s65
    %p67 = scmp.eq.s32.totalorder %s20, 0
    %p68 = por %p66, %p67
    %s70 = sadd.s32 %s69, 1
    %p73 = scmp.eq.s32.totalorder %s14, 1
    %p74 = scmp.ne.s32.totalorder %s69, %s71
    %p75 = scmp.eq.s32.totalorder %s14, 0
    %p76 = por %p74, %p75
    %p77 = scmp.ne.s32.totalorder %s69, %s71
    %p78 = scmp.eq.s32.totalorder %s19, 1
    %p79 = por %p77, %p78
    %p80 = scmp.ne.s32.totalorder %s71, %s72
    %p81 = scmp.eq.s32.totalorder %s19, 0
    %p82 = por %p80, %p81
    %p83 = scmp.ne.s32.totalorder %s71, %s72
    %p84 = scmp.eq.s32.totalorder %s20, 1
    %p85 = por %p83, %p84
    %p87 = scmp.ne.s32.totalorder %s72, %s86
    %p88 = scmp.eq.s32.totalorder %s20, 0
    %p89 = por %p87, %p88
    %s91 = sadd.s32 %s90, 1
    %p94 = scmp.eq.s32.totalorder %s14, 1
    %p95 = scmp.ne.s32.totalorder %s90, %s92
    %p96 = scmp.eq.s32.totalorder %s14, 0
    %p97 = por %p95, %p96
    %p98 = scmp.ne.s32.totalorder %s90, %s92
    %p99 = scmp.eq.s32.totalorder %s19, 1
    %p100 = por %p98, %p99
    %p101 = scmp.ne.s32.totalorder %s92, %s93
    %p102 = scmp.eq.s32.totalorder %s19, 0
    %p103 = por %p101, %p102
    %p104 = scmp.ne.s32.totalorder %s92, %s93
    %p105 = scmp.eq.s32.totalorder %s20, 1
    %p106 = por %p104, %p105
    %p108 = scmp.ne.s32.totalorder %s93, %s107
    %p109 = scmp.eq.s32.totalorder %s20, 0
    %p110 = por %p108, %p109
    %s112 = sadd.s32 %s111, 1
    %p115 = scmp.eq.s32.totalorder %s14, 1
    %p116 = scmp.ne.s32.totalorder %s111, %s113
    %p117 = scmp.eq.s32.totalorder %s14, 0
    %p118 = por %p116, %p117
    %p119 = scmp.ne.s32.totalorder %s111, %s113
    %p120 = scmp.eq.s32.totalorder %s19, 1
    %p121 = por %p119, %p120
    %p122 = scmp.ne.s32.totalorder %s113, %s114
    %p123 = scmp.eq.s32.totalorder %s19, 0
    %p124 = por %p122, %p123
    %p125 = scmp.ne.s32.totalorder %s113, %s114
    %p126 = scmp.eq.s32.totalorder %s20, 1
    %p127 = por %p125, %p126
    %p129 = scmp.ne.s32.totalorder %s114, %s128
    %p130 = scmp.eq.s32.totalorder %s20, 0
    %p131 = por %p129, %p130
    %s133 = sadd.s32 %s132, 1
    %p136 = scmp.eq.s32.totalorder %s14, 1
    %p137 = scmp.ne.s32.totalorder %s132, %s134
    %p138 = scmp.eq.s32.totalorder %s14, 0
    %p139 = por %p137, %p138
    %p140 = scmp.ne.s32.totalorder %s132, %s134
    %p141 = scmp.eq.s32.totalorder %s19, 1
    %p142 = por %p140, %p141
    %p143 = scmp.ne.s32.totalorder %s134, %s135
    %p144 = scmp.eq.s32.totalorder %s19, 0
    %p145 = por %p143, %p144
    %p146 = scmp.ne.s32.totalorder %s134, %s135
    %p147 = scmp.eq.s32.totalorder %s20, 1
    %p148 = por %p146, %p147
    %p150 = scmp.ne.s32.totalorder %s135, %s149
    %p151 = scmp.eq.s32.totalorder %s20, 0
    %p152 = por %p150, %p151
    %s154 = sadd.s32 %s153, 1
    %p157 = scmp.eq.s32.totalorder %s14, 1
    %p158 = scmp.ne.s32.totalorder %s153, %s155
    %p159 = scmp.eq.s32.totalorder %s14, 0
    %p160 = por %p158, %p159
    %p161 = scmp.ne.s32.totalorder %s153, %s155
    %p162 = scmp.eq.s32.totalorder %s19, 1
    %p163 = por %p161, %p162
    %p164 = scmp.ne.s32.totalorder %s155, %s156
    %p165 = scmp.eq.s32.totalorder %s19, 0
    %p166 = por %p164, %p165
    %p167 = scmp.ne.s32.totalorder %s155, %s156
    %p168 = scmp.eq.s32.totalorder %s20, 1
    %p169 = por %p167, %p168
    %p171 = scmp.ne.s32.totalorder %s156, %s170
    %p172 = scmp.eq.s32.totalorder %s20, 0
    %p173 = por %p171, %p172
    %s175 = sadd.s32 %s174, 1
    %p178 = scmp.eq.s32.totalorder %s14, 1
    %p179 = scmp.ne.s32.totalorder %s174, %s176
    %p180 = scmp.eq.s32.totalorder %s14, 0
    %p181 = por %p179, %p180
    %p182 = scmp.ne.s32.totalorder %s174, %s176
    %p183 = scmp.eq.s32.totalorder %s19, 1
    %p184 = por %p182, %p183
    %p185 = scmp.ne.s32.totalorder %s176, %s177
    %p186 = scmp.eq.s32.totalorder %s19, 0
    %p187 = por %p185, %p186
    %p188 = scmp.ne.s32.totalorder %s176, %s177
    %p189 = scmp.eq.s32.totalorder %s20, 1
    %p190 = por %p188, %p189
    %p192 = scmp.ne.s32.totalorder %s177, %s191
    %p193 = scmp.eq.s32.totalorder %s20, 0
    %p194 = por %p192, %p193
    %s195 = ssub.s32 %s14, %s21
    %p196 = scmp.eq.s32.totalorder %s195, 0
    %s198 = sadd.s32 %s197, 1
    %s199 = scalar_select %p196, %s197, %s198
    %p202 = pneg %p196
    %p203 = scmp.eq.s32.totalorder %s14, 1
    %p204 = por %p202, %p203
    %p205 = scmp.ne.s32.totalorder %s197, %s200
    %p206 = scmp.eq.s32.totalorder %s14, 0
    %p207 = por %p205, %p206
    %p208 = scmp.ne.s32.totalorder %s197, %s200
    %p209 = scmp.eq.s32.totalorder %s19, 1
    %p210 = por %p208, %p209
    %p211 = scmp.ne.s32.totalorder %s200, %s201
    %p212 = scmp.eq.s32.totalorder %s19, 0
    %p213 = por %p211, %p212
    %p214 = scmp.ne.s32.totalorder %s200, %s201
    %p215 = scmp.eq.s32.totalorder %s20, 1
    %p216 = por %p214, %p215
    %p218 = scmp.ne.s32.totalorder %s201, %s217
    %p219 = scmp.eq.s32.totalorder %s20, 0
    %p220 = por %p218, %p219
    %p221 = scmp.le.s32.totalorder 1, %s14
    %p222 = scmp.lt.s32.totalorder %s14, 3
    %p223 = pnand %p221, %p222
    %p224 = pneg %p223
    // Predicated region
    $region9: #{regular_bottleneck_pallas.1} parent=5 // pred_check
      _
    $region10: #{regular_bottleneck_pallas.1} parent=5 // pred_check_branch
      %226 = sbr.rel (%p223) target = $region12
    $region11: #{regular_bottleneck_pallas.1} parent=5 // pred_region
      %s227 = ssub.s32 %s14, 1
      // Predicated region
      $region13: #{regular_bottleneck_pallas.1} parent=11 // pred_check
        %p228 = pneg %p61
      $region14: #{regular_bottleneck_pallas.1} parent=11 // pred_check_branch
        %230 = sbr.rel (%p228) target = $region16
      $region15: #{regular_bottleneck_pallas.1} parent=11 // pred_region
        _
      $region16: #{regular_bottleneck_pallas.1} parent=11 // pred_fallthru
        _
      // Predicated region
      $region17: #{regular_bottleneck_pallas.1} parent=11 // pred_check
        %p231 = pneg %p82
      $region18: #{regular_bottleneck_pallas.1} parent=11 // pred_check_branch
        %233 = sbr.rel (%p231) target = $region20
      $region19: #{regular_bottleneck_pallas.1} parent=11 // pred_region
        _
      $region20: #{regular_bottleneck_pallas.1} parent=11 // pred_fallthru
        _
      // Predicated region
      $region21: #{regular_bottleneck_pallas.1} parent=11 // pred_check
        %p234 = pneg %p103
      $region22: #{regular_bottleneck_pallas.1} parent=11 // pred_check_branch
        %236 = sbr.rel (%p234) target = $region24
      $region23: #{regular_bottleneck_pallas.1} parent=11 // pred_region
        _
      $region24: #{regular_bottleneck_pallas.1} parent=11 // pred_fallthru
        _
      // Predicated region
      $region25: #{regular_bottleneck_pallas.1} parent=11 // pred_check
        %p237 = pneg %p124
      $region26: #{regular_bottleneck_pallas.1} parent=11 // pred_check_branch
        %239 = sbr.rel (%p237) target = $region28
      $region27: #{regular_bottleneck_pallas.1} parent=11 // pred_region
        _
      $region28: #{regular_bottleneck_pallas.1} parent=11 // pred_fallthru
        _
      // Predicated region
      $region29: #{regular_bottleneck_pallas.1} parent=11 // pred_check
        %p240 = pneg %p145
      $region30: #{regular_bottleneck_pallas.1} parent=11 // pred_check_branch
        %242 = sbr.rel (%p240) target = $region32
      $region31: #{regular_bottleneck_pallas.1} parent=11 // pred_region
        _
      $region32: #{regular_bottleneck_pallas.1} parent=11 // pred_fallthru
        _
      // Predicated region
      $region33: #{regular_bottleneck_pallas.1} parent=11 // pred_check
        %p243 = pneg %p166
      $region34: #{regular_bottleneck_pallas.1} parent=11 // pred_check_branch
        %245 = sbr.rel (%p243) target = $region36
      $region35: #{regular_bottleneck_pallas.1} parent=11 // pred_region
        _
      $region36: #{regular_bottleneck_pallas.1} parent=11 // pred_fallthru
        _
      // Predicated region
      $region37: #{regular_bottleneck_pallas.1} parent=11 // pred_check
        %p246 = pneg %p187
      $region38: #{regular_bottleneck_pallas.1} parent=11 // pred_check_branch
        %248 = sbr.rel (%p246) target = $region40
      $region39: #{regular_bottleneck_pallas.1} parent=11 // pred_region
        _
      $region40: #{regular_bottleneck_pallas.1} parent=11 // pred_fallthru
        _
    $region12: #{regular_bottleneck_pallas.1} parent=5 // pred_fallthru
      _
    %p249 = scmp.lt.s32.totalorder %s14, 2
    // Predicated region
    $region41: #{regular_bottleneck_pallas.1} parent=5 // pred_check
      %p250 = pneg %p249
    $region42: #{regular_bottleneck_pallas.1} parent=5 // pred_check_branch
      %252 = sbr.rel (%p250) target = $region44
    $region43: #{regular_bottleneck_pallas.1} parent=5 // pred_region
      // Predicated region
      $region45: #{regular_bottleneck_pallas.1} parent=43 // pred_check
        %p253 = pneg %p34
      $region46: #{regular_bottleneck_pallas.1} parent=43 // pred_check_branch
        %255 = sbr.rel (%p253) target = $region48
      $region47: #{regular_bottleneck_pallas.1} parent=43 // pred_region
        %p256 = scmp.lt.s32.totalorder %s14, 1
        %s257 = scalar_select %p256, %s14, 1
        %s258 = smul.addr %s257, 4
        %s259 = smul.addr %s258, 8
        %s260 = scalar_lea.vmem %s0, %s259
      $region48: #{regular_bottleneck_pallas.1} parent=43 // pred_fallthru
        _
    $region44: #{regular_bottleneck_pallas.1} parent=5 // pred_fallthru
      _
    %p261 = scmp.le.s32.totalorder 1, %s14
    %p262 = scmp.lt.s32.totalorder %s14, 3
    %p263 = pnand %p261, %p262
    %p264 = pneg %p263
    // Predicated region
    $region49: #{regular_bottleneck_pallas.1} parent=5 // pred_check
      _
    $region50: #{regular_bottleneck_pallas.1} parent=5 // pred_check_branch
      %266 = sbr.rel (%p263) target = $region52
    $region51: #{regular_bottleneck_pallas.1} parent=5 // pred_region
      %s267 = ssub.s32 %s14, 1
      %p268 = scmp.lt.s32.totalorder %s19, 1
      %s269 = scalar_select %p268, %s19, 1
      %s270 = smul.addr %s269, 4
      %s271 = smul.addr %s270, 8
      %s272 = scalar_lea.vmem %s0, %s271
      %p273 = pneg %p40
      %p274 = pneg %p37
      %p275 = pneg %p61
      %p276 = pneg %p58
      %p277 = pneg %p82
      %p278 = pneg %p79
      %p279 = pneg %p103
      %p280 = pneg %p100
      %p281 = pneg %p124
      %p282 = pneg %p121
      %p283 = pneg %p145
      %p284 = pneg %p142
      %p285 = pneg %p166
      %p286 = pneg %p163
      %p287 = pneg %p187
      %p288 = pneg %p184
      %p289 = pneg %p213
      %p290 = pneg %p210
      %p291 = scmp.lt.s32.totalorder %s19, 1
      %s292 = scalar_select %p291, %s19, 1
      %s293 = smul.addr %s292, 4
      %s294 = smul.addr %s293, 8
      %s295 = scalar_lea.vmem %s8, %s294
      %p296 = scmp.lt.s32.totalorder %s19, 1
      %s297 = scalar_select %p296, %s19, 1
      %s298 = smul.addr %s297, 4
      %s299 = smul.addr %s298, 8
      %s300 = scalar_lea.vmem %s0, %s299
      %p301 = scmp.lt.s32.totalorder %s19, 1
      %s302 = scalar_select %p301, %s19, 1
      %s303 = smul.addr %s302, 4
      %s304 = smul.addr %s303, 8
      %s305 = scalar_lea.vmem %s8, %s304
      %v306 = vld [vmem:[%s2] sm:$0xf]
      %v307 = vld [vmem:[%s300] sm:$0xff]
      %v308 = vld [vmem:[%s300 + $0x8] sm:$0xff]
      %v309 = vld [vmem:[%s300 + $0x10] sm:$0xff]
      %v310 = vld [vmem:[%s300 + $0x18] sm:$0xff]
      %v311 = vld [vmem:[%s3] sm:$0xf]
      %313 = vset.pattern.permute.xlu0 0
      %314 = vperm.xlu0 %313, %v311
      %v315 = vpop.permute.xlu0 %314
      %vm317 = vcmask 130048
      %v319 = vsel %vm317, %v306, 0
      %321 = vmatprep.subr.mxu0 %v308
      %322 = vmatpush1.msra.mxu0 %v307
      %323 = vmatprep.subr.mxu0 %v310
      %324 = vmatpush1.msra.mxu0 %v309
      %325 = vmatprep.subr.mxu0 0.0
      %326 = vmatpush1.msra.mxu0 0.0
      %327 = vmatprep.subr.mxu0 0.0
      %328 = vmatpush1.msra.mxu0 0.0
      %329 = vmatprep.subr.mxu0 0.0
      %330 = vmatpush1.msra.mxu0 0.0
      %331 = vmatprep.subr.mxu0 0.0
      %332 = vmatpush1.msra.mxu0 0.0
      %333 = vmatprep.subr.mxu0 0.0
      %334 = vmatpush1.msra.mxu0 0.0
      %335 = vmatprep.subr.mxu0 0.0
      %336 = vmatpush1.msra.mxu0 0.0
      %337 = vmatprep.subr.mxu0 0.0
      %338 = vmatpush1.msra.mxu0 0.0
      %339 = vmatprep.subr.mxu0 0.0
      %340 = vmatpush1.msra.mxu0 0.0
      %341 = vmatprep.subr.mxu0 0.0
      %342 = vmatpush1.msra.mxu0 0.0
      %343 = vmatprep.subr.mxu0 0.0
      %344 = vmatpush1.msra.mxu0 0.0
      %345 = vmatprep.subr.mxu0 0.0
      %346 = vmatpush1.msra.mxu0 0.0
      %347 = vmatprep.subr.mxu0 0.0
      %348 = vmatpush1.msra.mxu0 0.0
      %349 = vmatprep.subr.mxu0 0.0
      %350 = vmatpush1.msra.mxu0 0.0
      %351 = vmatprep.subr.mxu0 0.0
      %352 = vmatpush1.msra.mxu0 0.0
      %353 = vmatprep.subr.mxu0 0.0
      %354 = vmatpush1.msra.mxu0 0.0
      %355 = vmatprep.subr.mxu0 0.0
      %356 = vmatpush1.msra.mxu0 0.0
      %357 = vmatprep.subr.mxu0 0.0
      %358 = vmatpush1.msra.mxu0 0.0
      %359 = vmatprep.subr.mxu0 0.0
      %360 = vmatpush1.msra.mxu0 0.0
      %361 = vmatprep.subr.mxu0 0.0
      %362 = vmatpush1.msra.mxu0 0.0
      %363 = vmatprep.subr.mxu0 0.0
      %364 = vmatpush1.msra.mxu0 0.0
      %365 = vmatprep.subr.mxu0 0.0
      %366 = vmatpush1.msra.mxu0 0.0
      %367 = vmatprep.subr.mxu0 0.0
      %368 = vmatpush1.msra.mxu0 0.0
      %369 = vmatprep.subr.mxu0 0.0
      %370 = vmatpush1.msra.mxu0 0.0
      %371 = vmatprep.subr.mxu0 0.0
      %372 = vmatpush1.msra.mxu0 0.0
      %373 = vmatprep.subr.mxu0 0.0
      %374 = vmatpush1.msra.mxu0 0.0
      %375 = vmatprep.subr.mxu0 0.0
      %376 = vmatpush1.msra.mxu0 0.0
      %377 = vmatprep.subr.mxu0 0.0
      %378 = vmatpush1.msra.mxu0 0.0
      %379 = vmatprep.subr.mxu0 0.0
      %380 = vmatpush1.msra.mxu0 0.0
      %381 = vmatprep.subr.mxu0 0.0
      %382 = vmatpush1.msra.mxu0 0.0
      %383 = vmatprep.subr.mxu0 0.0
      %384 = vmatpush1.msra.mxu0 0.0
      %385 = vmatprep.mubr.f32.mxu0 0.0
      %386 = vmatmul.mubr.f32.gmra.mrb[0].mxu0 %v319
      %v387 = vpop.f32.mrb[0].mxu0
      %v388 = vadd.f32 %v315, %v387
      %v389 = vpop.f32.mrb[0].mxu0
      %v390 = vadd.f32 %v315, %v389
      %391 = vdwg.mxu0
      %v392 = vmax.f32 %v388, 0.0
      %v393 = vmax.f32 %v390, 0.0
      %s394 = scalar_lea.vmem %s4, 16
      %v395 = vld [vmem:[%s394] sm:$0xf]
      %396 = vrot.lane.b32.xlu0 %v392, 17
      %v397 = vpop.permute.xlu0 %396
      %398 = vrot.lane.b32.xlu0 %v393, 17
      %v399 = vpop.permute.xlu0 %398
      %v400 = vlaneseq
      %v401 = vand.u32 %v400, 127
      %vm402 = vcmp.lt.s32.totalorder %v401, 17
      %v403 = vsel %vm402, %v397, %v399
      %v404 = vsel %vm402, %v399, %v397
      %v405 = vld [vmem:[%s1] ss:$8 sm:$0x3]
      %v407 = vlaneseq
      %v408 = vshrl.u32 %v407, 7
      %v409 = vsub.s32 0, %v408
      %v410 = vrot.slane %v405, %v409
      %v411 = vlaneseq
      %v412 = vshrl.u32 %v411, 7
      %v413 = vsub.s32 1, %v412
      %v414 = vrot.slane %v405, %v413
      %v417 = vmul.f32 %v404, %v410
      %v418 = vmul.f32 %v403, %v414
      %v419 = vld [vmem:[%s4] sm:$0xf]
      %vm420 = vcmask 31744
      %v422 = vsel %vm420, %v419, 0
      %vm424 = vcmask 1043456
      %v426 = vsel %vm424, %v417, 0
      %v429 = vsel %vm424, %v418, 0
      %431 = vmatprep.subr.mxu0 %v429
      %432 = vmatpush1.msra.mxu0 %v426
      %433 = vmatprep.subr.mxu0 0.0
      %434 = vmatpush1.msra.mxu0 0.0
      %435 = vmatprep.subr.mxu0 0.0
      %436 = vmatpush1.msra.mxu0 0.0
      %437 = vmatprep.subr.mxu0 0.0
      %438 = vmatpush1.msra.mxu0 0.0
      %439 = vmatprep.subr.mxu0 0.0
      %440 = vmatpush1.msra.mxu0 0.0
      %441 = vmatprep.subr.mxu0 0.0
      %442 = vmatpush1.msra.mxu0 0.0
      %443 = vmatprep.subr.mxu0 0.0
      %444 = vmatpush1.msra.mxu0 0.0
      %445 = vmatprep.subr.mxu0 0.0
      %446 = vmatpush1.msra.mxu0 0.0
      %447 = vmatprep.subr.mxu0 0.0
      %448 = vmatpush1.msra.mxu0 0.0
      %449 = vmatprep.subr.mxu0 0.0
      %450 = vmatpush1.msra.mxu0 0.0
      %451 = vmatprep.subr.mxu0 0.0
      %452 = vmatpush1.msra.mxu0 0.0
      %453 = vmatprep.subr.mxu0 0.0
      %454 = vmatpush1.msra.mxu0 0.0
      %455 = vmatprep.subr.mxu0 0.0
      %456 = vmatpush1.msra.mxu0 0.0
      %457 = vmatprep.subr.mxu0 0.0
      %458 = vmatpush1.msra.mxu0 0.0
      %459 = vmatprep.subr.mxu0 0.0
      %460 = vmatpush1.msra.mxu0 0.0
      %461 = vmatprep.subr.mxu0 0.0
      %462 = vmatpush1.msra.mxu0 0.0
      %463 = vmatprep.subr.mxu0 0.0
      %464 = vmatpush1.msra.mxu0 0.0
      %465 = vmatprep.subr.mxu0 0.0
      %466 = vmatpush1.msra.mxu0 0.0
      %467 = vmatprep.subr.mxu0 0.0
      %468 = vmatpush1.msra.mxu0 0.0
      %469 = vmatprep.subr.mxu0 0.0
      %470 = vmatpush1.msra.mxu0 0.0
      %471 = vmatprep.subr.mxu0 0.0
      %472 = vmatpush1.msra.mxu0 0.0
      %473 = vmatprep.subr.mxu0 0.0
      %474 = vmatpush1.msra.mxu0 0.0
      %475 = vmatprep.subr.mxu0 0.0
      %476 = vmatpush1.msra.mxu0 0.0
      %477 = vmatprep.subr.mxu0 0.0
      %478 = vmatpush1.msra.mxu0 0.0
      %479 = vmatprep.subr.mxu0 0.0
      %480 = vmatpush1.msra.mxu0 0.0
      %481 = vmatprep.subr.mxu0 0.0
      %482 = vmatpush1.msra.mxu0 0.0
      %483 = vmatprep.subr.mxu0 0.0
      %484 = vmatpush1.msra.mxu0 0.0
      %485 = vmatprep.subr.mxu0 0.0
      %486 = vmatpush1.msra.mxu0 0.0
      %487 = vmatprep.subr.mxu0 0.0
      %488 = vmatpush1.msra.mxu0 0.0
      %489 = vmatprep.subr.mxu0 0.0
      %490 = vmatpush1.msra.mxu0 0.0
      %491 = vmatprep.subr.mxu0 0.0
      %492 = vmatpush1.msra.mxu0 0.0
      %493 = vmatprep.subr.mxu0 0.0
      %494 = vmatpush1.msra.mxu0 0.0
      %495 = vmatprep.mubr.f32.mxu0 0.0
      %496 = vmatmul.mubr.f32.gmra.mrb[0].mxu0 %v422
      %v497 = vpop.f32.mrb[0].mxu0
      %v498 = vadd.f32 0.0, %v497
      %v499 = vpop.f32.mrb[0].mxu0
      %v500 = vadd.f32 0.0, %v499
      %501 = vdwg.mxu0
      %v503 = vsel %vm420, %v395, 0
      %v506 = vsel %vm424, %v392, 0
      %v509 = vsel %vm424, %v393, 0
      %511 = vmatprep.subr.mxu0 %v509
      %512 = vmatpush1.msra.mxu0 %v506
      %513 = vmatprep.subr.mxu0 0.0
      %514 = vmatpush1.msra.mxu0 0.0
      %515 = vmatprep.subr.mxu0 0.0
      %516 = vmatpush1.msra.mxu0 0.0
      %517 = vmatprep.subr.mxu0 0.0
      %518 = vmatpush1.msra.mxu0 0.0
      %519 = vmatprep.subr.mxu0 0.0
      %520 = vmatpush1.msra.mxu0 0.0
      %521 = vmatprep.subr.mxu0 0.0
      %522 = vmatpush1.msra.mxu0 0.0
      %523 = vmatprep.subr.mxu0 0.0
      %524 = vmatpush1.msra.mxu0 0.0
      %525 = vmatprep.subr.mxu0 0.0
      %526 = vmatpush1.msra.mxu0 0.0
      %527 = vmatprep.subr.mxu0 0.0
      %528 = vmatpush1.msra.mxu0 0.0
      %529 = vmatprep.subr.mxu0 0.0
      %530 = vmatpush1.msra.mxu0 0.0
      %531 = vmatprep.subr.mxu0 0.0
      %532 = vmatpush1.msra.mxu0 0.0
      %533 = vmatprep.subr.mxu0 0.0
      %534 = vmatpush1.msra.mxu0 0.0
      %535 = vmatprep.subr.mxu0 0.0
      %536 = vmatpush1.msra.mxu0 0.0
      %537 = vmatprep.subr.mxu0 0.0
      %538 = vmatpush1.msra.mxu0 0.0
      %539 = vmatprep.subr.mxu0 0.0
      %540 = vmatpush1.msra.mxu0 0.0
      %541 = vmatprep.subr.mxu0 0.0
      %542 = vmatpush1.msra.mxu0 0.0
      %543 = vmatprep.subr.mxu0 0.0
      %544 = vmatpush1.msra.mxu0 0.0
      %545 = vmatprep.subr.mxu0 0.0
      %546 = vmatpush1.msra.mxu0 0.0
      %547 = vmatprep.subr.mxu0 0.0
      %548 = vmatpush1.msra.mxu0 0.0
      %549 = vmatprep.subr.mxu0 0.0
      %550 = vmatpush1.msra.mxu0 0.0
      %551 = vmatprep.subr.mxu0 0.0
      %552 = vmatpush1.msra.mxu0 0.0
      %553 = vmatprep.subr.mxu0 0.0
      %554 = vmatpush1.msra.mxu0 0.0
      %555 = vmatprep.subr.mxu0 0.0
      %556 = vmatpush1.msra.mxu0 0.0
      %557 = vmatprep.subr.mxu0 0.0
      %558 = vmatpush1.msra.mxu0 0.0
      %559 = vmatprep.subr.mxu0 0.0
      %560 = vmatpush1.msra.mxu0 0.0
      %561 = vmatprep.subr.mxu0 0.0
      %562 = vmatpush1.msra.mxu0 0.0
      %563 = vmatprep.subr.mxu0 0.0
      %564 = vmatpush1.msra.mxu0 0.0
      %565 = vmatprep.subr.mxu0 0.0
      %566 = vmatpush1.msra.mxu0 0.0
      %567 = vmatprep.subr.mxu0 0.0
      %568 = vmatpush1.msra.mxu0 0.0
      %569 = vmatprep.subr.mxu0 0.0
      %570 = vmatpush1.msra.mxu0 0.0
      %571 = vmatprep.subr.mxu0 0.0
      %572 = vmatpush1.msra.mxu0 0.0
      %573 = vmatprep.subr.mxu0 0.0
      %574 = vmatpush1.msra.mxu0 0.0
      %575 = vmatprep.mubr.f32.mxu0 0.0
      %576 = vmatmul.mubr.f32.gmra.mrb[0].mxu0 %v503
      %v577 = vpop.f32.mrb[0].mxu0
      %v578 = vadd.f32 %v498, %v577
      %v579 = vpop.f32.mrb[0].mxu0
      %v580 = vadd.f32 %v500, %v579
      %581 = vdwg.mxu0
      %582 = vrot.lane.b32.xlu0 %v392, 16
      %v583 = vpop.permute.xlu0 %582
      %584 = vrot.lane.b32.xlu0 %v393, 16
      %v585 = vpop.permute.xlu0 %584
      %vm586 = vcmp.lt.s32.totalorder %v401, 16
      %v587 = vsel %vm586, %v583, %v585
      %v588 = vsel %vm586, %v585, %v583
      %s589 = scalar_lea.vmem %s1, 1
      %v590 = vld [vmem:[%s589] ss:$8 sm:$0x3]
      %v592 = vlaneseq
      %v593 = vshrl.u32 %v592, 7
      %v594 = vsub.s32 0, %v593
      %v595 = vrot.slane %v590, %v594
      %v596 = vlaneseq
      %v597 = vshrl.u32 %v596, 7
      %v598 = vsub.s32 1, %v597
      %v599 = vrot.slane %v590, %v598
      %v602 = vmul.f32 %v588, %v595
      %v603 = vmul.f32 %v587, %v599
      %s604 = scalar_lea.vmem %s4, 4
      %v605 = vld [vmem:[%s604] sm:$0xf]
      %v607 = vsel %vm420, %v605, 0
      %v610 = vsel %vm424, %v602, 0
      %v613 = vsel %vm424, %v603, 0
      %615 = vmatprep.subr.mxu0 %v613
      %616 = vmatpush1.msra.mxu0 %v610
      %617 = vmatprep.subr.mxu0 0.0
      %618 = vmatpush1.msra.mxu0 0.0
      %619 = vmatprep.subr.mxu0 0.0
      %620 = vmatpush1.msra.mxu0 0.0
      %621 = vmatprep.subr.mxu0 0.0
      %622 = vmatpush1.msra.mxu0 0.0
      %623 = vmatprep.subr.mxu0 0.0
      %624 = vmatpush1.msra.mxu0 0.0
      %625 = vmatprep.subr.mxu0 0.0
      %626 = vmatpush1.msra.mxu0 0.0
      %627 = vmatprep.subr.mxu0 0.0
      %628 = vmatpush1.msra.mxu0 0.0
      %629 = vmatprep.subr.mxu0 0.0
      %630 = vmatpush1.msra.mxu0 0.0
      %631 = vmatprep.subr.mxu0 0.0
      %632 = vmatpush1.msra.mxu0 0.0
      %633 = vmatprep.subr.mxu0 0.0
      %634 = vmatpush1.msra.mxu0 0.0
      %635 = vmatprep.subr.mxu0 0.0
      %636 = vmatpush1.msra.mxu0 0.0
      %637 = vmatprep.subr.mxu0 0.0
      %638 = vmatpush1.msra.mxu0 0.0
      %639 = vmatprep.subr.mxu0 0.0
      %640 = vmatpush1.msra.mxu0 0.0
      %641 = vmatprep.subr.mxu0 0.0
      %642 = vmatpush1.msra.mxu0 0.0
      %643 = vmatprep.subr.mxu0 0.0
      %644 = vmatpush1.msra.mxu0 0.0
      %645 = vmatprep.subr.mxu0 0.0
      %646 = vmatpush1.msra.mxu0 0.0
      %647 = vmatprep.subr.mxu0 0.0
      %648 = vmatpush1.msra.mxu0 0.0
      %649 = vmatprep.subr.mxu0 0.0
      %650 = vmatpush1.msra.mxu0 0.0
      %651 = vmatprep.subr.mxu0 0.0
      %652 = vmatpush1.msra.mxu0 0.0
      %653 = vmatprep.subr.mxu0 0.0
      %654 = vmatpush1.msra.mxu0 0.0
      %655 = vmatprep.subr.mxu0 0.0
      %656 = vmatpush1.msra.mxu0 0.0
      %657 = vmatprep.subr.mxu0 0.0
      %658 = vmatpush1.msra.mxu0 0.0
      %659 = vmatprep.subr.mxu0 0.0
      %660 = vmatpush1.msra.mxu0 0.0
      %661 = vmatprep.subr.mxu0 0.0
      %662 = vmatpush1.msra.mxu0 0.0
      %663 = vmatprep.subr.mxu0 0.0
      %664 = vmatpush1.msra.mxu0 0.0
      %665 = vmatprep.subr.mxu0 0.0
      %666 = vmatpush1.msra.mxu0 0.0
      %667 = vmatprep.subr.mxu0 0.0
      %668 = vmatpush1.msra.mxu0 0.0
      %669 = vmatprep.subr.mxu0 0.0
      %670 = vmatpush1.msra.mxu0 0.0
      %671 = vmatprep.subr.mxu0 0.0
      %672 = vmatpush1.msra.mxu0 0.0
      %673 = vmatprep.subr.mxu0 0.0
      %674 = vmatpush1.msra.mxu0 0.0
      %675 = vmatprep.subr.mxu0 0.0
      %676 = vmatpush1.msra.mxu0 0.0
      %677 = vmatprep.subr.mxu0 0.0
      %678 = vmatpush1.msra.mxu0 0.0
      %679 = vmatprep.mubr.f32.mxu0 0.0
      %680 = vmatmul.mubr.f32.gmra.mrb[0].mxu0 %v607
      %v681 = vpop.f32.mrb[0].mxu0
      %v682 = vadd.f32 0.0, %v681
      %v683 = vpop.f32.mrb[0].mxu0
      %v684 = vadd.f32 0.0, %v683
      %685 = vdwg.mxu0
      %v686 = vadd.f32 %v578, %v682
      %v687 = vadd.f32 %v580, %v684
      %688 = vrot.lane.b32.xlu0 %v392, 15
      %v689 = vpop.permute.xlu0 %688
      %690 = vrot.lane.b32.xlu0 %v393, 15
      %v691 = vpop.permute.xlu0 %690
      %vm692 = vcmp.lt.s32.totalorder %v401, 15
      %v693 = vsel %vm692, %v689, %v691
      %v694 = vsel %vm692, %v691, %v689
      %s695 = scalar_lea.vmem %s1, 2
      %v696 = vld [vmem:[%s695] ss:$8 sm:$0x3]
      %v698 = vlaneseq
      %v699 = vshrl.u32 %v698, 7
      %v700 = vsub.s32 0, %v699
      %v701 = vrot.slane %v696, %v700
      %v702 = vlaneseq
      %v703 = vshrl.u32 %v702, 7
      %v704 = vsub.s32 1, %v703
      %v705 = vrot.slane %v696, %v704
      %v708 = vmul.f32 %v694, %v701
      %v709 = vmul.f32 %v693, %v705
      %s710 = scalar_lea.vmem %s4, 8
      %v711 = vld [vmem:[%s710] sm:$0xf]
      %v713 = vsel %vm420, %v711, 0
      %v716 = vsel %vm424, %v708, 0
      %v719 = vsel %vm424, %v709, 0
      %721 = vmatprep.subr.mxu0 %v719
      %722 = vmatpush1.msra.mxu0 %v716
      %723 = vmatprep.subr.mxu0 0.0
      %724 = vmatpush1.msra.mxu0 0.0
      %725 = vmatprep.subr.mxu0 0.0
      %726 = vmatpush1.msra.mxu0 0.0
      %727 = vmatprep.subr.mxu0 0.0
      %728 = vmatpush1.msra.mxu0 0.0
      %729 = vmatprep.subr.mxu0 0.0
      %730 = vmatpush1.msra.mxu0 0.0
      %731 = vmatprep.subr.mxu0 0.0
      %732 = vmatpush1.msra.mxu0 0.0
      %733 = vmatprep.subr.mxu0 0.0
      %734 = vmatpush1.msra.mxu0 0.0
      %735 = vmatprep.subr.mxu0 0.0
      %736 = vmatpush1.msra.mxu0 0.0
      %737 = vmatprep.subr.mxu0 0.0
      %738 = vmatpush1.msra.mxu0 0.0
      %739 = vmatprep.subr.mxu0 0.0
      %740 = vmatpush1.msra.mxu0 0.0
      %741 = vmatprep.subr.mxu0 0.0
      %742 = vmatpush1.msra.mxu0 0.0
      %743 = vmatprep.subr.mxu0 0.0
      %744 = vmatpush1.msra.mxu0 0.0
      %745 = vmatprep.subr.mxu0 0.0
      %746 = vmatpush1.msra.mxu0 0.0
      %747 = vmatprep.subr.mxu0 0.0
      %748 = vmatpush1.msra.mxu0 0.0
      %749 = vmatprep.subr.mxu0 0.0
      %750 = vmatpush1.msra.mxu0 0.0
      %751 = vmatprep.subr.mxu0 0.0
      %752 = vmatpush1.msra.mxu0 0.0
      %753 = vmatprep.subr.mxu0 0.0
      %754 = vmatpush1.msra.mxu0 0.0
      %755 = vmatprep.subr.mxu0 0.0
      %756 = vmatpush1.msra.mxu0 0.0
      %757 = vmatprep.subr.mxu0 0.0
      %758 = vmatpush1.msra.mxu0 0.0
      %759 = vmatprep.subr.mxu0 0.0
      %760 = vmatpush1.msra.mxu0 0.0
      %761 = vmatprep.subr.mxu0 0.0
      %762 = vmatpush1.msra.mxu0 0.0
      %763 = vmatprep.subr.mxu0 0.0
      %764 = vmatpush1.msra.mxu0 0.0
      %765 = vmatprep.subr.mxu0 0.0
      %766 = vmatpush1.msra.mxu0 0.0
      %767 = vmatprep.subr.mxu0 0.0
      %768 = vmatpush1.msra.mxu0 0.0
      %769 = vmatprep.subr.mxu0 0.0
      %770 = vmatpush1.msra.mxu0 0.0
      %771 = vmatprep.subr.mxu0 0.0
      %772 = vmatpush1.msra.mxu0 0.0
      %773 = vmatprep.subr.mxu0 0.0
      %774 = vmatpush1.msra.mxu0 0.0
      %775 = vmatprep.subr.mxu0 0.0
      %776 = vmatpush1.msra.mxu0 0.0
      %777 = vmatprep.subr.mxu0 0.0
      %778 = vmatpush1.msra.mxu0 0.0
      %779 = vmatprep.subr.mxu0 0.0
      %780 = vmatpush1.msra.mxu0 0.0
      %781 = vmatprep.subr.mxu0 0.0
      %782 = vmatpush1.msra.mxu0 0.0
      %783 = vmatprep.subr.mxu0 0.0
      %784 = vmatpush1.msra.mxu0 0.0
      %785 = vmatprep.mubr.f32.mxu0 0.0
      %786 = vmatmul.mubr.f32.gmra.mrb[0].mxu0 %v713
      %v787 = vpop.f32.mrb[0].mxu0
      %v788 = vadd.f32 0.0, %v787
      %v789 = vpop.f32.mrb[0].mxu0
      %v790 = vadd.f32 0.0, %v789
      %791 = vdwg.mxu0
      %v792 = vadd.f32 %v686, %v788
      %v793 = vadd.f32 %v687, %v790
      %794 = vrot.lane.b32.xlu0 %v392, 1
      %v795 = vpop.permute.xlu0 %794
      %796 = vrot.lane.b32.xlu0 %v393, 1
      %v797 = vpop.permute.xlu0 %796
      %vm798 = vcmp.lt.s32.totalorder %v401, 1
      %v799 = vsel %vm798, %v795, %v797
      %v800 = vsel %vm798, %v797, %v795
      %s801 = scalar_lea.vmem %s1, 3
      %v802 = vld [vmem:[%s801] ss:$8 sm:$0x3]
      %v804 = vlaneseq
      %v805 = vshrl.u32 %v804, 7
      %v806 = vsub.s32 0, %v805
      %v807 = vrot.slane %v802, %v806
      %v808 = vlaneseq
      %v809 = vshrl.u32 %v808, 7
      %v810 = vsub.s32 1, %v809
      %v811 = vrot.slane %v802, %v810
      %v814 = vmul.f32 %v800, %v807
      %v815 = vmul.f32 %v799, %v811
      %s816 = scalar_lea.vmem %s4, 12
      %v817 = vld [vmem:[%s816] sm:$0xf]
      %v819 = vsel %vm420, %v817, 0
      %v822 = vsel %vm424, %v814, 0
      %v825 = vsel %vm424, %v815, 0
      %827 = vmatprep.subr.mxu0 %v825
      %828 = vmatpush1.msra.mxu0 %v822
      %829 = vmatprep.subr.mxu0 0.0
      %830 = vmatpush1.msra.mxu0 0.0
      %831 = vmatprep.subr.mxu0 0.0
      %832 = vmatpush1.msra.mxu0 0.0
      %833 = vmatprep.subr.mxu0 0.0
      %834 = vmatpush1.msra.mxu0 0.0
      %835 = vmatprep.subr.mxu0 0.0
      %836 = vmatpush1.msra.mxu0 0.0
      %837 = vmatprep.subr.mxu0 0.0
      %838 = vmatpush1.msra.mxu0 0.0
      %839 = vmatprep.subr.mxu0 0.0
      %840 = vmatpush1.msra.mxu0 0.0
      %841 = vmatprep.subr.mxu0 0.0
      %842 = vmatpush1.msra.mxu0 0.0
      %843 = vmatprep.subr.mxu0 0.0
      %844 = vmatpush1.msra.mxu0 0.0
      %845 = vmatprep.subr.mxu0 0.0
      %846 = vmatpush1.msra.mxu0 0.0
      %847 = vmatprep.subr.mxu0 0.0
      %848 = vmatpush1.msra.mxu0 0.0
      %849 = vmatprep.subr.mxu0 0.0
      %850 = vmatpush1.msra.mxu0 0.0
      %851 = vmatprep.subr.mxu0 0.0
      %852 = vmatpush1.msra.mxu0 0.0
      %853 = vmatprep.subr.mxu0 0.0
      %854 = vmatpush1.msra.mxu0 0.0
      %855 = vmatprep.subr.mxu0 0.0
      %856 = vmatpush1.msra.mxu0 0.0
      %857 = vmatprep.subr.mxu0 0.0
      %858 = vmatpush1.msra.mxu0 0.0
      %859 = vmatprep.subr.mxu0 0.0
      %860 = vmatpush1.msra.mxu0 0.0
      %861 = vmatprep.subr.mxu0 0.0
      %862 = vmatpush1.msra.mxu0 0.0
      %863 = vmatprep.subr.mxu0 0.0
      %864 = vmatpush1.msra.mxu0 0.0
      %865 = vmatprep.subr.mxu0 0.0
      %866 = vmatpush1.msra.mxu0 0.0
      %867 = vmatprep.subr.mxu0 0.0
      %868 = vmatpush1.msra.mxu0 0.0
      %869 = vmatprep.subr.mxu0 0.0
      %870 = vmatpush1.msra.mxu0 0.0
      %871 = vmatprep.subr.mxu0 0.0
      %872 = vmatpush1.msra.mxu0 0.0
      %873 = vmatprep.subr.mxu0 0.0
      %874 = vmatpush1.msra.mxu0 0.0
      %875 = vmatprep.subr.mxu0 0.0
      %876 = vmatpush1.msra.mxu0 0.0
      %877 = vmatprep.subr.mxu0 0.0
      %878 = vmatpush1.msra.mxu0 0.0
      %879 = vmatprep.subr.mxu0 0.0
      %880 = vmatpush1.msra.mxu0 0.0
      %881 = vmatprep.subr.mxu0 0.0
      %882 = vmatpush1.msra.mxu0 0.0
      %883 = vmatprep.subr.mxu0 0.0
      %884 = vmatpush1.msra.mxu0 0.0
      %885 = vmatprep.subr.mxu0 0.0
      %886 = vmatpush1.msra.mxu0 0.0
      %887 = vmatprep.subr.mxu0 0.0
      %888 = vmatpush1.msra.mxu0 0.0
      %889 = vmatprep.subr.mxu0 0.0
      %890 = vmatpush1.msra.mxu0 0.0
      %891 = vmatprep.mubr.f32.mxu0 0.0
      %892 = vmatmul.mubr.f32.gmra.mrb[0].mxu0 %v819
      %v893 = vpop.f32.mrb[0].mxu0
      %v894 = vadd.f32 0.0, %v893
      %v895 = vpop.f32.mrb[0].mxu0
      %v896 = vadd.f32 0.0, %v895
      %897 = vdwg.mxu0
      %v898 = vadd.f32 %v792, %v894
      %v899 = vadd.f32 %v793, %v896
      %900 = vrot.lane.b32.xlu0 %v392, 127
      %v901 = vpop.permute.xlu0 %900
      %902 = vrot.lane.b32.xlu0 %v393, 127
      %v903 = vpop.permute.xlu0 %902
      %vm904 = vcmp.lt.s32.totalorder %v401, 127
      %v905 = vsel %vm904, %v901, %v903
      %v906 = vsel %vm904, %v903, %v901
      %s907 = scalar_lea.vmem %s1, 5
      %v908 = vld [vmem:[%s907] ss:$8 sm:$0x3]
      %v910 = vlaneseq
      %v911 = vshrl.u32 %v910, 7
      %v912 = vsub.s32 0, %v911
      %v913 = vrot.slane %v908, %v912
      %v914 = vlaneseq
      %v915 = vshrl.u32 %v914, 7
      %v916 = vsub.s32 1, %v915
      %v917 = vrot.slane %v908, %v916
      %v920 = vmul.f32 %v905, %v913
      %v921 = vmul.f32 %v906, %v917
      %s922 = scalar_lea.vmem %s4, 20
      %v923 = vld [vmem:[%s922] sm:$0xf]
      %v925 = vsel %vm420, %v923, 0
      %v928 = vsel %vm424, %v920, 0
      %v931 = vsel %vm424, %v921, 0
      %933 = vmatprep.subr.mxu0 %v931
      %934 = vmatpush1.msra.mxu0 %v928
      %935 = vmatprep.subr.mxu0 0.0
      %936 = vmatpush1.msra.mxu0 0.0
      %937 = vmatprep.subr.mxu0 0.0
      %938 = vmatpush1.msra.mxu0 0.0
      %939 = vmatprep.subr.mxu0 0.0
      %940 = vmatpush1.msra.mxu0 0.0
      %941 = vmatprep.subr.mxu0 0.0
      %942 = vmatpush1.msra.mxu0 0.0
      %943 = vmatprep.subr.mxu0 0.0
      %944 = vmatpush1.msra.mxu0 0.0
      %945 = vmatprep.subr.mxu0 0.0
      %946 = vmatpush1.msra.mxu0 0.0
      %947 = vmatprep.subr.mxu0 0.0
      %948 = vmatpush1.msra.mxu0 0.0
      %949 = vmatprep.subr.mxu0 0.0
      %950 = vmatpush1.msra.mxu0 0.0
      %951 = vmatprep.subr.mxu0 0.0
      %952 = vmatpush1.msra.mxu0 0.0
      %953 = vmatprep.subr.mxu0 0.0
      %954 = vmatpush1.msra.mxu0 0.0
      %955 = vmatprep.subr.mxu0 0.0
      %956 = vmatpush1.msra.mxu0 0.0
      %957 = vmatprep.subr.mxu0 0.0
      %958 = vmatpush1.msra.mxu0 0.0
      %959 = vmatprep.subr.mxu0 0.0
      %960 = vmatpush1.msra.mxu0 0.0
      %961 = vmatprep.subr.mxu0 0.0
      %962 = vmatpush1.msra.mxu0 0.0
      %963 = vmatprep.subr.mxu0 0.0
      %964 = vmatpush1.msra.mxu0 0.0
      %965 = vmatprep.subr.mxu0 0.0
      %966 = vmatpush1.msra.mxu0 0.0
      %967 = vmatprep.subr.mxu0 0.0
      %968 = vmatpush1.msra.mxu0 0.0
      %969 = vmatprep.subr.mxu0 0.0
      %970 = vmatpush1.msra.mxu0 0.0
      %971 = vmatprep.subr.mxu0 0.0
      %972 = vmatpush1.msra.mxu0 0.0
      %973 = vmatprep.subr.mxu0 0.0
      %974 = vmatpush1.msra.mxu0 0.0
      %975 = vmatprep.subr.mxu0 0.0
      %976 = vmatpush1.msra.mxu0 0.0
      %977 = vmatprep.subr.mxu0 0.0
      %978 = vmatpush1.msra.mxu0 0.0
      %979 = vmatprep.subr.mxu0 0.0
      %980 = vmatpush1.msra.mxu0 0.0
      %981 = vmatprep.subr.mxu0 0.0
      %982 = vmatpush1.msra.mxu0 0.0
      %983 = vmatprep.subr.mxu0 0.0
      %984 = vmatpush1.msra.mxu0 0.0
      %985 = vmatprep.subr.mxu0 0.0
      %986 = vmatpush1.msra.mxu0 0.0
      %987 = vmatprep.subr.mxu0 0.0
      %988 = vmatpush1.msra.mxu0 0.0
      %989 = vmatprep.subr.mxu0 0.0
      %990 = vmatpush1.msra.mxu0 0.0
      %991 = vmatprep.subr.mxu0 0.0
      %992 = vmatpush1.msra.mxu0 0.0
      %993 = vmatprep.subr.mxu0 0.0
      %994 = vmatpush1.msra.mxu0 0.0
      %995 = vmatprep.subr.mxu0 0.0
      %996 = vmatpush1.msra.mxu0 0.0
      %997 = vmatprep.mubr.f32.mxu0 0.0
      %998 = vmatmul.mubr.f32.gmra.mrb[0].mxu0 %v925
      %v999 = vpop.f32.mrb[0].mxu0
      %v1000 = vadd.f32 0.0, %v999
      %v1001 = vpop.f32.mrb[0].mxu0
      %v1002 = vadd.f32 0.0, %v1001
      %1003 = vdwg.mxu0
      %v1004 = vadd.f32 %v898, %v1000
      %v1005 = vadd.f32 %v899, %v1002
      %1006 = vrot.lane.b32.xlu0 %v392, 113
      %v1007 = vpop.permute.xlu0 %1006
      %1008 = vrot.lane.b32.xlu0 %v393, 113
      %v1009 = vpop.permute.xlu0 %1008
      %vm1010 = vcmp.lt.s32.totalorder %v401, 113
      %v1011 = vsel %vm1010, %v1007, %v1009
      %v1012 = vsel %vm1010, %v1009, %v1007
      %s1013 = scalar_lea.vmem %s1, 6
      %v1014 = vld [vmem:[%s1013] ss:$8 sm:$0x3]
      %v1016 = vlaneseq
      %v1017 = vshrl.u32 %v1016, 7
      %v1018 = vsub.s32 0, %v1017
      %v1019 = vrot.slane %v1014, %v1018
      %v1020 = vlaneseq
      %v1021 = vshrl.u32 %v1020, 7
      %v1022 = vsub.s32 1, %v1021
      %v1023 = vrot.slane %v1014, %v1022
      %v1026 = vmul.f32 %v1011, %v1019
      %v1027 = vmul.f32 %v1012, %v1023
      %s1028 = scalar_lea.vmem %s4, 24
      %v1029 = vld [vmem:[%s1028] sm:$0xf]
      %v1031 = vsel %vm420, %v1029, 0
      %v1034 = vsel %vm424, %v1026, 0
      %v1037 = vsel %vm424, %v1027, 0
      %1039 = vmatprep.subr.mxu0 %v1037
      %1040 = vmatpush1.msra.mxu0 %v1034
      %1041 = vmatprep.subr.mxu0 0.0
      %1042 = vmatpush1.msra.mxu0 0.0
      %1043 = vmatprep.subr.mxu0 0.0
      %1044 = vmatpush1.msra.mxu0 0.0
      %1045 = vmatprep.subr.mxu0 0.0
      %1046 = vmatpush1.msra.mxu0 0.0
      %1047 = vmatprep.subr.mxu0 0.0
      %1048 = vmatpush1.msra.mxu0 0.0
      %1049 = vmatprep.subr.mxu0 0.0
      %1050 = vmatpush1.msra.mxu0 0.0
      %1051 = vmatprep.subr.mxu0 0.0
      %1052 = vmatpush1.msra.mxu0 0.0
      %1053 = vmatprep.subr.mxu0 0.0
      %1054 = vmatpush1.msra.mxu0 0.0
      %1055 = vmatprep.subr.mxu0 0.0
      %1056 = vmatpush1.msra.mxu0 0.0
      %1057 = vmatprep.subr.mxu0 0.0
      %1058 = vmatpush1.msra.mxu0 0.0
      %1059 = vmatprep.subr.mxu0 0.0
      %1060 = vmatpush1.msra.mxu0 0.0
      %1061 = vmatprep.subr.mxu0 0.0
      %1062 = vmatpush1.msra.mxu0 0.0
      %1063 = vmatprep.subr.mxu0 0.0
      %1064 = vmatpush1.msra.mxu0 0.0
      %1065 = vmatprep.subr.mxu0 0.0
      %1066 = vmatpush1.msra.mxu0 0.0
      %1067 = vmatprep.subr.mxu0 0.0
      %1068 = vmatpush1.msra.mxu0 0.0
      %1069 = vmatprep.subr.mxu0 0.0
      %1070 = vmatpush1.msra.mxu0 0.0
      %1071 = vmatprep.subr.mxu0 0.0
      %1072 = vmatpush1.msra.mxu0 0.0
      %1073 = vmatprep.subr.mxu0 0.0
      %1074 = vmatpush1.msra.mxu0 0.0
      %1075 = vmatprep.subr.mxu0 0.0
      %1076 = vmatpush1.msra.mxu0 0.0
      %1077 = vmatprep.subr.mxu0 0.0
      %1078 = vmatpush1.msra.mxu0 0.0
      %1079 = vmatprep.subr.mxu0 0.0
      %1080 = vmatpush1.msra.mxu0 0.0
      %1081 = vmatprep.subr.mxu0 0.0
      %1082 = vmatpush1.msra.mxu0 0.0
      %1083 = vmatprep.subr.mxu0 0.0
      %1084 = vmatpush1.msra.mxu0 0.0
      %1085 = vmatprep.subr.mxu0 0.0
      %1086 = vmatpush1.msra.mxu0 0.0
      %1087 = vmatprep.subr.mxu0 0.0
      %1088 = vmatpush1.msra.mxu0 0.0
      %1089 = vmatprep.subr.mxu0 0.0
      %1090 = vmatpush1.msra.mxu0 0.0
      %1091 = vmatprep.subr.mxu0 0.0
      %1092 = vmatpush1.msra.mxu0 0.0
      %1093 = vmatprep.subr.mxu0 0.0
      %1094 = vmatpush1.msra.mxu0 0.0
      %1095 = vmatprep.subr.mxu0 0.0
      %1096 = vmatpush1.msra.mxu0 0.0
      %1097 = vmatprep.subr.mxu0 0.0
      %1098 = vmatpush1.msra.mxu0 0.0
      %1099 = vmatprep.subr.mxu0 0.0
      %1100 = vmatpush1.msra.mxu0 0.0
      %1101 = vmatprep.subr.mxu0 0.0
      %1102 = vmatpush1.msra.mxu0 0.0
      %1103 = vmatprep.mubr.f32.mxu0 0.0
      %1104 = vmatmul.mubr.f32.gmra.mrb[0].mxu0 %v1031
      %v1105 = vpop.f32.mrb[0].mxu0
      %v1106 = vadd.f32 0.0, %v1105
      %v1107 = vpop.f32.mrb[0].mxu0
      %v1108 = vadd.f32 0.0, %v1107
      %1109 = vdwg.mxu0
      %v1110 = vadd.f32 %v1004, %v1106
      %v1111 = vadd.f32 %v1005, %v1108
      %1112 = vrot.lane.b32.xlu0 %v392, 112
      %v1113 = vpop.permute.xlu0 %1112
      %1114 = vrot.lane.b32.xlu0 %v393, 112
      %v1115 = vpop.permute.xlu0 %1114
      %vm1116 = vcmp.lt.s32.totalorder %v401, 112
      %v1117 = vsel %vm1116, %v1113, %v1115
      %v1118 = vsel %vm1116, %v1115, %v1113
      %s1119 = scalar_lea.vmem %s1, 7
      %v1120 = vld [vmem:[%s1119] ss:$8 sm:$0x3]
      %v1122 = vlaneseq
      %v1123 = vshrl.u32 %v1122, 7
      %v1124 = vsub.s32 0, %v1123
      %v1125 = vrot.slane %v1120, %v1124
      %v1126 = vlaneseq
      %v1127 = vshrl.u32 %v1126, 7
      %v1128 = vsub.s32 1, %v1127
      %v1129 = vrot.slane %v1120, %v1128
      %v1132 = vmul.f32 %v1117, %v1125
      %v1133 = vmul.f32 %v1118, %v1129
      %s1134 = scalar_lea.vmem %s4, 28
      %v1135 = vld [vmem:[%s1134] sm:$0xf]
      %v1137 = vsel %vm420, %v1135, 0
      %v1140 = vsel %vm424, %v1132, 0
      %v1143 = vsel %vm424, %v1133, 0
      %1145 = vmatprep.subr.mxu0 %v1143
      %1146 = vmatpush1.msra.mxu0 %v1140
      %1147 = vmatprep.subr.mxu0 0.0
      %1148 = vmatpush1.msra.mxu0 0.0
      %1149 = vmatprep.subr.mxu0 0.0
      %1150 = vmatpush1.msra.mxu0 0.0
      %1151 = vmatprep.subr.mxu0 0.0
      %1152 = vmatpush1.msra.mxu0 0.0
      %1153 = vmatprep.subr.mxu0 0.0
      %1154 = vmatpush1.msra.mxu0 0.0
      %1155 = vmatprep.subr.mxu0 0.0
      %1156 = vmatpush1.msra.mxu0 0.0
      %1157 = vmatprep.subr.mxu0 0.0
      %1158 = vmatpush1.msra.mxu0 0.0
      %1159 = vmatprep.subr.mxu0 0.0
      %1160 = vmatpush1.msra.mxu0 0.0
      %1161 = vmatprep.subr.mxu0 0.0
      %1162 = vmatpush1.msra.mxu0 0.0
      %1163 = vmatprep.subr.mxu0 0.0
      %1164 = vmatpush1.msra.mxu0 0.0
      %1165 = vmatprep.subr.mxu0 0.0
      %1166 = vmatpush1.msra.mxu0 0.0
      %1167 = vmatprep.subr.mxu0 0.0
      %1168 = vmatpush1.msra.mxu0 0.0
      %1169 = vmatprep.subr.mxu0 0.0
      %1170 = vmatpush1.msra.mxu0 0.0
      %1171 = vmatprep.subr.mxu0 0.0
      %1172 = vmatpush1.msra.mxu0 0.0
      %1173 = vmatprep.subr.mxu0 0.0
      %1174 = vmatpush1.msra.mxu0 0.0
      %1175 = vmatprep.subr.mxu0 0.0
      %1176 = vmatpush1.msra.mxu0 0.0
      %1177 = vmatprep.subr.mxu0 0.0
      %1178 = vmatpush1.msra.mxu0 0.0
      %1179 = vmatprep.subr.mxu0 0.0
      %1180 = vmatpush1.msra.mxu0 0.0
      %1181 = vmatprep.subr.mxu0 0.0
      %1182 = vmatpush1.msra.mxu0 0.0
      %1183 = vmatprep.subr.mxu0 0.0
      %1184 = vmatpush1.msra.mxu0 0.0
      %1185 = vmatprep.subr.mxu0 0.0
      %1186 = vmatpush1.msra.mxu0 0.0
      %1187 = vmatprep.subr.mxu0 0.0
      %1188 = vmatpush1.msra.mxu0 0.0
      %1189 = vmatprep.subr.mxu0 0.0
      %1190 = vmatpush1.msra.mxu0 0.0
      %1191 = vmatprep.subr.mxu0 0.0
      %1192 = vmatpush1.msra.mxu0 0.0
      %1193 = vmatprep.subr.mxu0 0.0
      %1194 = vmatpush1.msra.mxu0 0.0
      %1195 = vmatprep.subr.mxu0 0.0
      %1196 = vmatpush1.msra.mxu0 0.0
      %1197 = vmatprep.subr.mxu0 0.0
      %1198 = vmatpush1.msra.mxu0 0.0
      %1199 = vmatprep.subr.mxu0 0.0
      %1200 = vmatpush1.msra.mxu0 0.0
      %1201 = vmatprep.subr.mxu0 0.0
      %1202 = vmatpush1.msra.mxu0 0.0
      %1203 = vmatprep.subr.mxu0 0.0
      %1204 = vmatpush1.msra.mxu0 0.0
      %1205 = vmatprep.subr.mxu0 0.0
      %1206 = vmatpush1.msra.mxu0 0.0
      %1207 = vmatprep.subr.mxu0 0.0
      %1208 = vmatpush1.msra.mxu0 0.0
      %1209 = vmatprep.mubr.f32.mxu0 0.0
      %1210 = vmatmul.mubr.f32.gmra.mrb[0].mxu0 %v1137
      %v1211 = vpop.f32.mrb[0].mxu0
      %v1212 = vadd.f32 0.0, %v1211
      %v1213 = vpop.f32.mrb[0].mxu0
      %v1214 = vadd.f32 0.0, %v1213
      %1215 = vdwg.mxu0
      %v1216 = vadd.f32 %v1110, %v1212
      %v1217 = vadd.f32 %v1111, %v1214
      %1218 = vrot.lane.b32.xlu0 %v392, 111
      %v1219 = vpop.permute.xlu0 %1218
      %1220 = vrot.lane.b32.xlu0 %v393, 111
      %v1221 = vpop.permute.xlu0 %1220
      %vm1222 = vcmp.lt.s32.totalorder %v401, 111
      %v1223 = vsel %vm1222, %v1219, %v1221
      %v1224 = vsel %vm1222, %v1221, %v1219
      %s1225 = scalar_lea.vmem %s1, 16
      %v1226 = vld [vmem:[%s1225] ss:$8 sm:$0x3]
      %v1228 = vlaneseq
      %v1229 = vshrl.u32 %v1228, 7
      %v1230 = vsub.s32 0, %v1229
      %v1231 = vrot.slane %v1226, %v1230
      %v1232 = vlaneseq
      %v1233 = vshrl.u32 %v1232, 7
      %v1234 = vsub.s32 1, %v1233
      %v1235 = vrot.slane %v1226, %v1234
      %v1238 = vmul.f32 %v1223, %v1231
      %v1239 = vmul.f32 %v1224, %v1235
      %s1240 = scalar_lea.vmem %s4, 32
      %v1241 = vld [vmem:[%s1240] sm:$0xf]
      %v1243 = vsel %vm420, %v1241, 0
      %v1246 = vsel %vm424, %v1238, 0
      %v1249 = vsel %vm424, %v1239, 0
      %1251 = vmatprep.subr.mxu0 %v1249
      %1252 = vmatpush1.msra.mxu0 %v1246
      %1253 = vmatprep.subr.mxu0 0.0
      %1254 = vmatpush1.msra.mxu0 0.0
      %1255 = vmatprep.subr.mxu0 0.0
      %1256 = vmatpush1.msra.mxu0 0.0
      %1257 = vmatprep.subr.mxu0 0.0
      %1258 = vmatpush1.msra.mxu0 0.0
      %1259 = vmatprep.subr.mxu0 0.0
      %1260 = vmatpush1.msra.mxu0 0.0
      %1261 = vmatprep.subr.mxu0 0.0
      %1262 = vmatpush1.msra.mxu0 0.0
      %1263 = vmatprep.subr.mxu0 0.0
      %1264 = vmatpush1.msra.mxu0 0.0
      %1265 = vmatprep.subr.mxu0 0.0
      %1266 = vmatpush1.msra.mxu0 0.0
      %1267 = vmatprep.subr.mxu0 0.0
      %1268 = vmatpush1.msra.mxu0 0.0
      %1269 = vmatprep.subr.mxu0 0.0
      %1270 = vmatpush1.msra.mxu0 0.0
      %1271 = vmatprep.subr.mxu0 0.0
      %1272 = vmatpush1.msra.mxu0 0.0
      %1273 = vmatprep.subr.mxu0 0.0
      %1274 = vmatpush1.msra.mxu0 0.0
      %1275 = vmatprep.subr.mxu0 0.0
      %1276 = vmatpush1.msra.mxu0 0.0
      %1277 = vmatprep.subr.mxu0 0.0
      %1278 = vmatpush1.msra.mxu0 0.0
      %1279 = vmatprep.subr.mxu0 0.0
      %1280 = vmatpush1.msra.mxu0 0.0
      %1281 = vmatprep.subr.mxu0 0.0
      %1282 = vmatpush1.msra.mxu0 0.0
      %1283 = vmatprep.subr.mxu0 0.0
      %1284 = vmatpush1.msra.mxu0 0.0
      %1285 = vmatprep.subr.mxu0 0.0
      %1286 = vmatpush1.msra.mxu0 0.0
      %1287 = vmatprep.subr.mxu0 0.0
      %1288 = vmatpush1.msra.mxu0 0.0
      %1289 = vmatprep.subr.mxu0 0.0
      %1290 = vmatpush1.msra.mxu0 0.0
      %1291 = vmatprep.subr.mxu0 0.0
      %1292 = vmatpush1.msra.mxu0 0.0
      %1293 = vmatprep.subr.mxu0 0.0
      %1294 = vmatpush1.msra.mxu0 0.0
      %1295 = vmatprep.subr.mxu0 0.0
      %1296 = vmatpush1.msra.mxu0 0.0
      %1297 = vmatprep.subr.mxu0 0.0
      %1298 = vmatpush1.msra.mxu0 0.0
      %1299 = vmatprep.subr.mxu0 0.0
      %1300 = vmatpush1.msra.mxu0 0.0
      %1301 = vmatprep.subr.mxu0 0.0
      %1302 = vmatpush1.msra.mxu0 0.0
      %1303 = vmatprep.subr.mxu0 0.0
      %1304 = vmatpush1.msra.mxu0 0.0
      %1305 = vmatprep.subr.mxu0 0.0
      %1306 = vmatpush1.msra.mxu0 0.0
      %1307 = vmatprep.subr.mxu0 0.0
      %1308 = vmatpush1.msra.mxu0 0.0
      %1309 = vmatprep.subr.mxu0 0.0
      %1310 = vmatpush1.msra.mxu0 0.0
      %1311 = vmatprep.subr.mxu0 0.0
      %1312 = vmatpush1.msra.mxu0 0.0
      %1313 = vmatprep.subr.mxu0 0.0
      %1314 = vmatpush1.msra.mxu0 0.0
      %1315 = vmatprep.mubr.f32.mxu0 0.0
      %1316 = vmatmul.mubr.f32.gmra.mrb[0].mxu0 %v1243
      %v1317 = vpop.f32.mrb[0].mxu0
      %v1318 = vadd.f32 0.0, %v1317
      %v1319 = vpop.f32.mrb[0].mxu0
      %v1320 = vadd.f32 0.0, %v1319
      %1321 = vdwg.mxu0
      %v1322 = vadd.f32 %v1216, %v1318
      %v1323 = vadd.f32 %v1217, %v1320
      %v1324 = vld [vmem:[%s5] sm:$0xf]
      %1326 = vset.pattern.permute.xlu0 0
      %1327 = vperm.xlu0 %1326, %v1324
      %v1328 = vpop.permute.xlu0 %1327
      %v1330 = vadd.f32 %v1322, %v1328
      %v1331 = vadd.f32 %v1323, %v1328
      %v1332 = vmax.f32 %v1330, 0.0
      %v1333 = vmax.f32 %v1331, 0.0
      %v1334 = vld [vmem:[%s6] sm:$0xff]
      %v1335 = vld [vmem:[%s6 + $0x8] sm:$0xff]
      %v1336 = vld [vmem:[%s7] sm:$0xff]
      %v1337 = vld [vmem:[%s7 + $0x8] sm:$0xff]
      %1339 = vset.pattern.permute.xlu0 0
      %1340 = vperm.xlu0 %1339, %v1336
      %v1341 = vpop.permute.xlu0 %1340
      %1344 = vset.pattern.permute.xlu0 0
      %1345 = vperm.xlu0 %1344, %v1337
      %v1346 = vpop.permute.xlu0 %1345
      %v1349 = vsel %vm420, %v1334, 0
      %v1352 = vsel %vm420, %v1335, 0
      %v1355 = vsel %vm424, %v1332, 0
      %v1358 = vsel %vm424, %v1333, 0
      %1360 = vmatprep.subr.mxu0 %v1358
      %1361 = vmatpush1.msra.mxu0 %v1355
      %1362 = vmatprep.subr.mxu0 0.0
      %1363 = vmatpush1.msra.mxu0 0.0
      %1364 = vmatprep.subr.mxu0 0.0
      %1365 = vmatpush1.msra.mxu0 0.0
      %1366 = vmatprep.subr.mxu0 0.0
      %1367 = vmatpush1.msra.mxu0 0.0
      %1368 = vmatprep.subr.mxu0 0.0
      %1369 = vmatpush1.msra.mxu0 0.0
      %1370 = vmatprep.subr.mxu0 0.0
      %1371 = vmatpush1.msra.mxu0 0.0
      %1372 = vmatprep.subr.mxu0 0.0
      %1373 = vmatpush1.msra.mxu0 0.0
      %1374 = vmatprep.subr.mxu0 0.0
      %1375 = vmatpush1.msra.mxu0 0.0
      %1376 = vmatprep.subr.mxu0 0.0
      %1377 = vmatpush1.msra.mxu0 0.0
      %1378 = vmatprep.subr.mxu0 0.0
      %1379 = vmatpush1.msra.mxu0 0.0
      %1380 = vmatprep.subr.mxu0 0.0
      %1381 = vmatpush1.msra.mxu0 0.0
      %1382 = vmatprep.subr.mxu0 0.0
      %1383 = vmatpush1.msra.mxu0 0.0
      %1384 = vmatprep.subr.mxu0 0.0
      %1385 = vmatpush1.msra.mxu0 0.0
      %1386 = vmatprep.subr.mxu0 0.0
      %1387 = vmatpush1.msra.mxu0 0.0
      %1388 = vmatprep.subr.mxu0 0.0
      %1389 = vmatpush1.msra.mxu0 0.0
      %1390 = vmatprep.subr.mxu0 0.0
      %1391 = vmatpush1.msra.mxu0 0.0
      %1392 = vmatprep.subr.mxu0 0.0
      %1393 = vmatpush1.msra.mxu0 0.0
      %1394 = vmatprep.subr.mxu0 0.0
      %1395 = vmatpush1.msra.mxu0 0.0
      %1396 = vmatprep.subr.mxu0 0.0
      %1397 = vmatpush1.msra.mxu0 0.0
      %1398 = vmatprep.subr.mxu0 0.0
      %1399 = vmatpush1.msra.mxu0 0.0
      %1400 = vmatprep.subr.mxu0 0.0
      %1401 = vmatpush1.msra.mxu0 0.0
      %1402 = vmatprep.subr.mxu0 0.0
      %1403 = vmatpush1.msra.mxu0 0.0
      %1404 = vmatprep.subr.mxu0 0.0
      %1405 = vmatpush1.msra.mxu0 0.0
      %1406 = vmatprep.subr.mxu0 0.0
      %1407 = vmatpush1.msra.mxu0 0.0
      %1408 = vmatprep.subr.mxu0 0.0
      %1409 = vmatpush1.msra.mxu0 0.0
      %1410 = vmatprep.subr.mxu0 0.0
      %1411 = vmatpush1.msra.mxu0 0.0
      %1412 = vmatprep.subr.mxu0 0.0
      %1413 = vmatpush1.msra.mxu0 0.0
      %1414 = vmatprep.subr.mxu0 0.0
      %1415 = vmatpush1.msra.mxu0 0.0
      %1416 = vmatprep.subr.mxu0 0.0
      %1417 = vmatpush1.msra.mxu0 0.0
      %1418 = vmatprep.subr.mxu0 0.0
      %1419 = vmatpush1.msra.mxu0 0.0
      %1420 = vmatprep.subr.mxu0 0.0
      %1421 = vmatpush1.msra.mxu0 0.0
      %1422 = vmatprep.subr.mxu0 0.0
      %1423 = vmatpush1.msra.mxu0 0.0
      %1424 = vmatprep.mubr.f32.mxu0 0.0
      %1425 = vmatmul.mubr.f32.gmra.mrb[0].mxu0 %v1349
      %v1426 = vpop.f32.mrb[0].mxu0
      %v1427 = vadd.f32 %v1341, %v1426
      %v1428 = vpop.f32.mrb[0].mxu0
      %v1429 = vadd.f32 %v1341, %v1428
      %1430 = vmatprep.mubr.f32.mxu0 0.0
      %1431 = vmatmul.mubr.f32.gmra.mrb[0].mxu0 %v1352
      %v1432 = vpop.f32.mrb[0].mxu0
      %v1433 = vadd.f32 %v1346, %v1432
      %v1434 = vpop.f32.mrb[0].mxu0
      %v1435 = vadd.f32 %v1346, %v1434
      %1436 = vdwg.mxu0
      %v1437 = vmax.f32 %v1427, 0.0
      %v1438 = vmax.f32 %v1429, 0.0
      %v1439 = vmax.f32 %v1433, 0.0
      %v1440 = vmax.f32 %v1435, 0.0
      %v1441 = vadd.f32 %v307, %v1437
      %v1442 = vadd.f32 %v308, %v1438
      %v1443 = vadd.f32 %v309, %v1439
      %v1444 = vadd.f32 %v310, %v1440
      %v1445 = vmax.f32 %v1441, 0.0
      %v1446 = vmax.f32 %v1442, 0.0
      %v1447 = vmax.f32 %v1443, 0.0
      %v1448 = vmax.f32 %v1444, 0.0
      %1449 = vst [vmem:[%s305] sm:$0xff] %v1445
      %1450 = vst [vmem:[%s305 + $0x8] sm:$0xff] %v1446
      %1451 = vst [vmem:[%s305 + $0x10] sm:$0xff] %v1447
      %1452 = vst [vmem:[%s305 + $0x18] sm:$0xff] %v1448
      %p1453 = scmp.lt.s32.totalorder %s19, 1
      %s1454 = scalar_select %p1453, %s19, 1
      %s1455 = smul.addr %s1454, 4
      %s1456 = smul.addr %s1455, 8
      %s1457 = scalar_lea.vmem %s8, %s1456
      // Predicated region
      $region53: #{regular_bottleneck_pallas.1} parent=51 // pred_check
        %p1458 = pneg %p210
      $region54: #{regular_bottleneck_pallas.1} parent=51 // pred_check_branch
        %1460 = sbr.rel (%p1458) target = $region56
      $region55: #{regular_bottleneck_pallas.1} parent=51 // pred_region
        _
      $region56: #{regular_bottleneck_pallas.1} parent=51 // pred_fallthru
        _
    $region52: #{regular_bottleneck_pallas.1} parent=5 // pred_fallthru
      _
    %p1461 = scmp.le.s32.totalorder 2, %s14
    // Predicated region
    $region57: #{regular_bottleneck_pallas.1} parent=5 // pred_check
      %p1462 = pneg %p1461
    $region58: #{regular_bottleneck_pallas.1} parent=5 // pred_check_branch
      %1464 = sbr.rel (%p1462) target = $region60
    $region59: #{regular_bottleneck_pallas.1} parent=5 // pred_region
      %s1465 = ssub.s32 %s14, 2
      // Predicated region
      $region61: #{regular_bottleneck_pallas.1} parent=59 // pred_check
        %p1466 = pneg %p216
      $region62: #{regular_bottleneck_pallas.1} parent=59 // pred_check_branch
        %1468 = sbr.rel (%p1466) target = $region64
      $region63: #{regular_bottleneck_pallas.1} parent=59 // pred_region
        %p1469 = scmp.lt.s32.totalorder %s20, 1
        %s1470 = scalar_select %p1469, %s20, 1
        %s1471 = smul.addr %s1470, 4
        %s1472 = smul.addr %s1471, 8
        %s1473 = scalar_lea.vmem %s8, %s1472
      $region64: #{regular_bottleneck_pallas.1} parent=59 // pred_fallthru
        _
    $region60: #{regular_bottleneck_pallas.1} parent=5 // pred_fallthru
      _
  $region6: #{regular_bottleneck_pallas.1} parent=0 // loop_footer
    %s18 = sadd.s32 1, %s14
  $region7: #{regular_bottleneck_pallas.1} parent=0 // loop_footer_branch
    %13 = sbr.rel target = $region3
  $region8: #{regular_bottleneck_pallas.1} parent=0 // loop_exit
    _

</llo_original>
